<compile_context>
chip_gen: v7x
topology: tpu7x:2x2x1
jax: 0.10.0
libtpu: 0.0.40
codegen_flags: <defaults>
</compile_context>

<pallas_src>
import functools

import jax
import jax.numpy as jnp
from jax import lax
from jax.experimental import pallas as pl
from jax.experimental.pallas import tpu as pltpu

HIGH_CONSTANT = 2.0
TINY_CONSTANT = 1e-5

# Deterministic hyper-parameters (module __init__ args).
LAMBDA_VAL = 5.0          # hyperparameter of blackbox backprop; only used by TrueRanker.backward
MARGIN = 0.05
weight_fn = jnp.log1p     # weight_fn chosen deterministically as log(1 + x)

_VMEM_TEMP_BUDGET = 32 << 20        # soft budget for O(n_tile * L^2) temporaries
_VMEM_LIMIT_BYTES = 48 * 1024 * 1024


def _choose_n_tile(n, l, budget_bytes=_VMEM_TEMP_BUDGET):
    """Largest row tile whose pairwise O(n_tile*L^2) temporaries fit the soft VMEM budget.

    Returns either n itself or a multiple-of-8 divisor of n (keeps blocks sublane-aligned
    and tiling exact, so no padding/masking is needed)."""
    bytes_per_row = 5 * l * l * 4 + 4 * l * 4   # ~5 L^2-sized f32-equivalent live temps/row
    max_rows = max(1, budget_bytes // bytes_per_row)
    if n <= max_rows:
        return n
    cands = [t for t in range(8, n, 8) if n % t == 0]
    fitting = [t for t in cands if t <= max_rows]
    if fitting:
        return max(fitting)
    if cands:
        return min(cands)   # smallest aligned tile; may exceed the soft budget (limit has headroom)
    return n                # no aligned divisor; fall back to the whole array


def _rank_normalised_pairwise(vals, tri, *, pos_axis_last, with_ties, seq_len):
    """Normalised descending rank ((position + 1) / L) via pairwise comparison counting.

    vals: 2-D block of scores.
      pos_axis_last=True : vals is (rows, L)   -> rank within each row   (positions on lanes)
      pos_axis_last=False: vals is (L, lanes)  -> rank within each column (positions on sublanes)
    tri: (L, L) bool, tri[p, q] = (q > p).  Ties are broken by the larger index, matching a
    stable ascending argsort followed by flip (the PyTorch rank_normalised)."""
    if pos_axis_last:
        a = vals[:, :, None]        # value at position p
        b = vals[:, None, :]        # value at position q
        t = tri[None, :, :]
        reduce_axis = 2
    else:
        a = vals[:, None, :]        # value at position p
        b = vals[None, :, :]        # value at position q
        t = tri[:, :, None]
        reduce_axis = 1
    cmp = b > a
    if with_ties:
        cmp = jnp.logical_or(cmp, jnp.logical_and(b == a, t))
    count = jnp.sum(cmp.astype(jnp.float32), axis=reduce_axis)   # #elements ranked above p
    return (count + 1.0) / jnp.float32(seq_len)


def _recall_kernel(scores_ref, gt_ref, out_ref, *, margin, total_sequences, seq_len, lane_dense):
    scores = scores_ref[...]         # f32; (n_tile, L) or, if lane_dense, (L, n_tile)
    gt = gt_ref[...]                 # f32 in {0, 1}, same layout as scores

    shifted = scores - jnp.float32(margin) * (gt - 0.5)

    # Data-independent tie-break mask, used only by the first rank pass.
    p_idx = lax.broadcasted_iota(jnp.int32, (seq_len, seq_len), 0)
    q_idx = lax.broadcasted_iota(jnp.int32, (seq_len, seq_len), 1)
    tri = q_idx > p_idx

    pos_last = not lane_dense

    # TrueRanker.forward == rank_normalised
    ranks_among_all = _rank_normalised_pairwise(
        shifted, tri, pos_axis_last=pos_last, with_ties=True, seq_len=seq_len)

    scores_among_positive = HIGH_CONSTANT * gt - ranks_among_all
    # Second-pass values are provably distinct within a sequence (distinct k/L ranks, and the
    # +2*gt offset keeps positives/negatives in disjoint ranges) -> the tie branch is dead.
    ranks_among_positive = _rank_normalised_pairwise(
        scores_among_positive, tri, pos_axis_last=pos_last, with_ties=False, seq_len=seq_len)

    ranks_for_queries = (ranks_among_all - ranks_among_positive) * gt
    # TODO(synk): PyTorch asserts torch.all(ranks_for_queries > -1e-5); no in-kernel assert emitted.
    weighted = weight_fn(ranks_for_queries * jnp.float32(total_sequences))

    num_partial = jnp.sum(weighted)      # gt mask already applied; log1p(0) == 0
    den_partial = jnp.sum(gt)

    # Lane-dense per-tile output block: row 0 = partial numerator, row 1 = partial denominator.
    row = lax.broadcasted_iota(jnp.int32, (2, 128), 0)
    out_ref[0] = jnp.where(row == 0, num_partial, den_partial)


def recall_loss(score_sequences, gt_relevance_sequences, *, margin=MARGIN, n_tile=None):
    """Pallas-backed RecallLoss.forward.

    Inputs: [N, L] float32 scores, [N, L] 0/1 relevance (bool semantics reproduced in f32)."""
    scores = score_sequences.astype(jnp.float32)
    gt = gt_relevance_sequences.astype(jnp.float32)
    n, l = scores.shape

    if n_tile is None:
        n_tile = _choose_n_tile(n, l)
    assert n % n_tile == 0, f"n_tile={n_tile} must divide num_sequences={n}"
    num_tiles = n // n_tile

    # Lane-dense layout: put sequences on lanes when sequences are short but the tile is wide.
    lane_dense = (l < 128) and (n_tile > l) and (n_tile % 128 == 0 or n_tile == n)

    if lane_dense:
        scores_in, gt_in = scores.T, gt.T                          # (L, N): sequences on lanes
        in_specs = [pl.BlockSpec((l, n_tile), lambda i: (0, i)),
                    pl.BlockSpec((l, n_tile), lambda i: (0, i))]
    else:
        scores_in, gt_in = scores, gt                              # (N, L): positions on lanes
        in_specs = [pl.BlockSpec((n_tile, l), lambda i: (i, 0)),
                    pl.BlockSpec((n_tile, l), lambda i: (i, 0))]

    kernel = functools.partial(
        _recall_kernel, margin=float(margin), total_sequences=n, seq_len=l,
        lane_dense=lane_dense)

    partials = pl.pallas_call(
        kernel,
        grid=(num_tiles,),
        in_specs=in_specs,
        out_specs=pl.BlockSpec((1, 2, 128), lambda i: (i, 0, 0)),
        out_shape=jax.ShapeDtypeStruct((num_tiles, 2, 128), jnp.float32),
        compiler_params=pltpu.CompilerParams(
            dimension_semantics=("parallel",),
            vmem_limit_bytes=_VMEM_LIMIT_BYTES,
        ),
    )(scores_in, gt_in)

    # Global reduction + final divide outside the kernel (exact regardless of tiling; the
    # in-kernel multiplier is always the full N, never the tile size).
    numerator = jnp.sum(partials[:, 0, 0])
    denominator = jnp.sum(partials[:, 1, 0])
    # NOTE: matches reference semantics — an all-zero gt yields inf/nan (precondition: >=1 positive).
    return numerator / denominator


# ---------------- pure-JAX reference (argsort-based, mirrors PyTorch code) ----------------
def _rank_normalised_ref(s):
    L = s.shape[1]
    order_desc = jnp.flip(jnp.argsort(s, axis=1), axis=1)
    rank = jnp.argsort(order_desc, axis=1)
    return (rank + 1).astype(jnp.float32) / jnp.float32(L)


def recall_loss_ref(scores, gt, *, margin=MARGIN):
    N = scores.shape[0]
    gt = gt.astype(jnp.float32)
    deviations = gt - 0.5
    shifted = scores - margin * deviations
    ranks_among_all = _rank_normalised_ref(shifted)
    scores_among_positive = -ranks_among_all + HIGH_CONSTANT * gt
    ranks_among_positive = _rank_normalised_ref(scores_among_positive)
    ranks_for_queries = (ranks_among_all - ranks_among_positive) * gt * N
    return jnp.sum(weight_fn(ranks_for_queries * gt)) / jnp.sum(gt)


if __name__ == "__main__":
    key = jax.random.PRNGKey(0)
    k1, k2, k3, k4 = jax.random.split(key, 4)

    # Case 1: single tile, row-major (positions-on-lanes) layout.
    N, L = 16, 16
    scores = jax.random.uniform(k1, (N, L), dtype=jnp.float32, minval=-1.0, maxval=1.0)
    gt = (jax.random.uniform(k2, (N, L)) > 0.5).astype(jnp.float32)
    gt = gt.at[0, 0].set(1.0)   # guarantee at least one relevant item overall

    out = jax.block_until_ready(recall_loss(scores, gt))
    ref = jax.block_until_ready(recall_loss_ref(scores, gt))
    assert jnp.allclose(out, ref, atol=1e-5, rtol=1e-5), (out, ref)

    # Case 2: same inputs, forced 2-tile grid -> exercises the cross-tile partial-sum reduction.
    out_tiled = jax.block_until_ready(recall_loss(scores, gt, n_tile=8))
    assert jnp.allclose(out_tiled, ref, atol=1e-5, rtol=1e-5), (out_tiled, ref)

    # Case 3: many short sequences -> exercises the lane-dense (sequences-on-lanes) layout.
    N2, L2 = 128, 8
    scores2 = jax.random.uniform(k3, (N2, L2), dtype=jnp.float32, minval=-1.0, maxval=1.0)
    gt2 = (jax.random.uniform(k4, (N2, L2)) > 0.5).astype(jnp.float32)
    gt2 = gt2.at[0, 0].set(1.0)

    out2 = jax.block_until_ready(recall_loss(scores2, gt2))
    ref2 = jax.block_until_ready(recall_loss_ref(scores2, gt2))
    assert jnp.allclose(out2, ref2, atol=1e-5, rtol=1e-5), (out2, ref2)

    print("KERNEL_OK")
</pallas_src>

<mosaic_0001>
module attributes {stable_mosaic.version = 11 : i64} {
  func.func @_recall_kernel(%arg0: i32, %arg1: memref<16x16xf32, #tpu.memory_space<vmem>>, %arg2: memref<16x16xf32, #tpu.memory_space<vmem>>, %arg3: memref<1x2x128xf32, #tpu.memory_space<vmem>>) attributes {dimension_semantics = [#tpu.dimension_semantics<parallel>], iteration_bounds = array<i64: 1>, scalar_prefetch = 0 : i64, scratch_operands = 0 : i64, tpu.core_type = #tpu.core_type<tc>, window_params = [{transform_indices = @transform_0, window_bounds = array<i64: 16, 16>}, {transform_indices = @transform_1, window_bounds = array<i64: 16, 16>}, {transform_indices = @transform_2, window_bounds = array<i64: 1, 2, 128>}]} {
    %c0 = arith.constant 0 : index
    %c0_0 = arith.constant 0 : index
    %0 = vector.load %arg1[%c0, %c0_0] : memref<16x16xf32, #tpu.memory_space<vmem>>, vector<16x16xf32>
    %c0_1 = arith.constant 0 : index
    %c0_2 = arith.constant 0 : index
    %1 = vector.load %arg2[%c0_1, %c0_2] : memref<16x16xf32, #tpu.memory_space<vmem>>, vector<16x16xf32>
    %cst = arith.constant 5.000000e-01 : f32
    %2 = vector.broadcast %cst : f32 to vector<16x16xf32>
    %3 = arith.subf %1, %2 : vector<16x16xf32>
    %cst_3 = arith.constant 5.000000e-02 : f32
    %4 = vector.broadcast %cst_3 : f32 to vector<16x16xf32>
    %5 = arith.mulf %4, %3 : vector<16x16xf32>
    %6 = arith.subf %0, %5 : vector<16x16xf32>
    %7 = tpu.iota {dimensions = array<i32: 0>} : vector<16x16xi32>
    %8 = tpu.iota {dimensions = array<i32: 1>} : vector<16x16xi32>
    %9 = arith.cmpi sgt, %8, %7 : vector<16x16xi32>
    %10 = vector.shape_cast %6 : vector<16x16xf32> to vector<16x16x1xf32>
    %11 = vector.shape_cast %6 : vector<16x16xf32> to vector<16x1x16xf32>
    %12 = vector.shape_cast %9 : vector<16x16xi1> to vector<1x16x16xi1>
    %13 = vector.broadcast %11 : vector<16x1x16xf32> to vector<16x16x16xf32>
    %14 = vector.broadcast %10 : vector<16x16x1xf32> to vector<16x16x16xf32>
    %15 = arith.cmpf ogt, %13, %14 : vector<16x16x16xf32>
    %16 = vector.broadcast %11 : vector<16x1x16xf32> to vector<16x16x16xf32>
    %17 = vector.broadcast %10 : vector<16x16x1xf32> to vector<16x16x16xf32>
    %18 = arith.cmpf oeq, %16, %17 : vector<16x16x16xf32>
    %19 = vector.broadcast %12 : vector<1x16x16xi1> to vector<16x16x16xi1>
    %20 = arith.andi %18, %19 : vector<16x16x16xi1>
    %21 = arith.ori %15, %20 : vector<16x16x16xi1>
    %22 = arith.extui %21 : vector<16x16x16xi1> to vector<16x16x16xi32>
    %23 = arith.sitofp %22 : vector<16x16x16xi32> to vector<16x16x16xf32>
    %cst_4 = arith.constant dense<0.000000e+00> : vector<16x16xf32>
    %24 = vector.multi_reduction <add>, %23, %cst_4 [2] : vector<16x16x16xf32> to vector<16x16xf32>
    %cst_5 = arith.constant 1.000000e+00 : f32
    %25 = vector.broadcast %cst_5 : f32 to vector<16x16xf32>
    %26 = arith.addf %24, %25 : vector<16x16xf32>
    %cst_6 = arith.constant 1.600000e+01 : f32
    %27 = vector.broadcast %cst_6 : f32 to vector<16x16xf32>
    %28 = arith.divf %26, %27 : vector<16x16xf32>
    %cst_7 = arith.constant 2.000000e+00 : f32
    %29 = vector.broadcast %cst_7 : f32 to vector<16x16xf32>
    %30 = arith.mulf %29, %1 : vector<16x16xf32>
    %31 = arith.subf %30, %28 : vector<16x16xf32>
    %32 = vector.shape_cast %31 : vector<16x16xf32> to vector<16x16x1xf32>
    %33 = vector.shape_cast %31 : vector<16x16xf32> to vector<16x1x16xf32>
    %34 = vector.broadcast %33 : vector<16x1x16xf32> to vector<16x16x16xf32>
    %35 = vector.broadcast %32 : vector<16x16x1xf32> to vector<16x16x16xf32>
    %36 = arith.cmpf ogt, %34, %35 : vector<16x16x16xf32>
    %37 = arith.extui %36 : vector<16x16x16xi1> to vector<16x16x16xi32>
    %38 = arith.sitofp %37 : vector<16x16x16xi32> to vector<16x16x16xf32>
    %cst_8 = arith.constant dense<0.000000e+00> : vector<16x16xf32>
    %39 = vector.multi_reduction <add>, %38, %cst_8 [2] : vector<16x16x16xf32> to vector<16x16xf32>
    %cst_9 = arith.constant 1.000000e+00 : f32
    %40 = vector.broadcast %cst_9 : f32 to vector<16x16xf32>
    %41 = arith.addf %39, %40 : vector<16x16xf32>
    %cst_10 = arith.constant 1.600000e+01 : f32
    %42 = vector.broadcast %cst_10 : f32 to vector<16x16xf32>
    %43 = arith.divf %41, %42 : vector<16x16xf32>
    %44 = arith.subf %28, %43 : vector<16x16xf32>
    %45 = arith.mulf %44, %1 : vector<16x16xf32>
    %cst_11 = arith.constant 1.600000e+01 : f32
    %46 = vector.broadcast %cst_11 : f32 to vector<16x16xf32>
    %47 = arith.mulf %45, %46 : vector<16x16xf32>
    %48 = math.log1p %47 : vector<16x16xf32>
    %49 = vector.shape_cast %48 : vector<16x16xf32> to vector<1x16x16xf32>
    %cst_12 = arith.constant dense<0.000000e+00> : vector<1xf32>
    %50 = vector.multi_reduction <add>, %49, %cst_12 [1, 2] : vector<1x16x16xf32> to vector<1xf32>
    %51 = vector.shape_cast %50 : vector<1xf32> to vector<1x1x1xf32>
    %52 = vector.extract %51[0, 0, 0] : f32 from vector<1x1x1xf32>
    %53 = vector.shape_cast %1 : vector<16x16xf32> to vector<1x16x16xf32>
    %cst_13 = arith.constant dense<0.000000e+00> : vector<1xf32>
    %54 = vector.multi_reduction <add>, %53, %cst_13 [1, 2] : vector<1x16x16xf32> to vector<1xf32>
    %55 = vector.shape_cast %54 : vector<1xf32> to vector<1x1x1xf32>
    %56 = vector.extract %55[0, 0, 0] : f32 from vector<1x1x1xf32>
    %57 = tpu.iota {dimensions = array<i32: 0>} : vector<2x128xi32>
    %c0_i32 = arith.constant 0 : i32
    %58 = vector.broadcast %c0_i32 : i32 to vector<2x128xi32>
    %59 = arith.cmpi eq, %57, %58 : vector<2x128xi32>
    %60 = vector.broadcast %52 : f32 to vector<2x128xf32>
    %61 = vector.broadcast %56 : f32 to vector<2x128xf32>
    %62 = arith.select %59, %60, %61 : vector<2x128xi1>, vector<2x128xf32>
    %c0_14 = arith.constant 0 : index
    %c0_15 = arith.constant 0 : index
    %c0_16 = arith.constant 0 : index
    %63 = vector.load %arg3[%c0_14, %c0_15, %c0_16] : memref<1x2x128xf32, #tpu.memory_space<vmem>>, vector<1x2x128xf32>
    %64 = vector.shape_cast %63 : vector<1x2x128xf32> to vector<2x128xf32>
    %65 = vector.shape_cast %62 : vector<2x128xf32> to vector<1x2x128xf32>
    tpu.vector_store %arg3[%c0_14, %c0_15, %c0_16], %65 {strides = array<i32>} : memref<1x2x128xf32, #tpu.memory_space<vmem>>, vector<1x2x128xf32>,
    return
  }
  func.func @transform_0(%arg0: i32) -> (i32, i32) {
    %c0_i32 = arith.constant 0 : i32
    %c0_i32_0 = arith.constant 0 : i32
    return %arg0, %c0_i32 : i32, i32
  }
  func.func @transform_1(%arg0: i32) -> (i32, i32) {
    %c0_i32 = arith.constant 0 : i32
    %c0_i32_0 = arith.constant 0 : i32
    return %arg0, %c0_i32 : i32, i32
  }
  func.func @transform_2(%arg0: i32) -> (i32, i32, i32) {
    %c0_i32 = arith.constant 0 : i32
    %c0_i32_0 = arith.constant 0 : i32
    %c0_i32_1 = arith.constant 0 : i32
    return %arg0, %c0_i32, %c0_i32_0 : i32, i32, i32
  }
}

</mosaic_0001>

<llo_original>
// kernel: tpu_custom_call.1
$region0: #{tpu_custom_call.1}
  #allocation0 [shape = 'u32[]', space=smem, size = 0x4, offset = 0x4, fixed_abs, tag = 'smem constant byte address 0x4 - core index']
  #allocation1 [shape = 'u32[144,128]{1,0:T(1,128)}', space=vmem, size = 0x12000, scoped, tag = 'internal scratch']
  %s0 = inlined_call_operand.hbm [shape: f32[16,16], index: 0, kind: input, shape index: {}]
  %s1 = inlined_call_operand.hbm [shape: f32[16,16], index: 1, kind: input, shape index: {}]
  %s2 = inlined_call_operand.hbm [shape: f32[1,2,128], index: 2, kind: output, shape index: {}]
  %s3 = sld [smem:[#allocation0]]
  $region26: #{tpu_custom_call.1} parent=0
    _
  %s5 = ssub.s32 1, %s3
  %s6 = scalar_select 0, %s5, %s3
  $region1: #{tpu_custom_call.1} parent=0
    #allocation2 [shape = 'u8[8192]{0}', space=vmem, size = 0x2000, scoped, tag = 'input window, operand 0, single buffered']
    #allocation3 [shape = 's32[1]{0}', space=sflag, size = 0x4, scoped, tag = 'scoped memory for tpu_custom_call.1']
    #allocation4 [shape = 's32[1]{0}', space=sflag, size = 0x4, scoped, tag = 'scoped memory for tpu_custom_call.1']
    #allocation5 [shape = 'u8[8192]{0}', space=vmem, size = 0x2000, scoped, tag = 'input window, operand 1, single buffered']
    #allocation6 [shape = 's32[1]{0}', space=sflag, size = 0x4, scoped, tag = 'scoped memory for tpu_custom_call.1']
    #allocation7 [shape = 'u8[1024]{0}', space=vmem, size = 0x400, scoped, tag = 'output window, operand 0, single buffered']
    %7 = vsyncpa [#allocation3], 0
    %8 = vsyncpa [#allocation6], 0
    %9 = vsyncpa [#allocation4], 0
    // Predicated region
    $region2: #{tpu_custom_call.1} parent=1 // pred_check
      _
    $region3: #{tpu_custom_call.1} parent=1 // pred_check_branch
      %11 = sbr.rel (0) target = $region5
    $region4: #{tpu_custom_call.1} parent=1 // pred_region
      %s13 = ssub.s32 256, 256
      %14 = vsyncadd [#allocation3], %s13
      %s15 = sshll.u32 [#allocation2], 4
      %s16 = int_to_ptr.vmem [resolvable:$true] %s15
      %21 = dma.hbm_to_vmem [thread:$0]  %s0, 256, %s16, [#allocation3], 128, 128, 8
    $region5: #{tpu_custom_call.1} parent=1 // pred_fallthru
      _
    // Predicated region
    $region6: #{tpu_custom_call.1} parent=1 // pred_check
      _
    $region7: #{tpu_custom_call.1} parent=1 // pred_check_branch
      %23 = sbr.rel (0) target = $region9
    $region8: #{tpu_custom_call.1} parent=1 // pred_region
      %s25 = ssub.s32 256, 256
      %26 = vsyncadd [#allocation6], %s25
      %s27 = sshll.u32 [#allocation5], 4
      %s28 = int_to_ptr.vmem [resolvable:$true] %s27
      %33 = dma.hbm_to_vmem [thread:$0]  %s1, 256, %s28, [#allocation6], 128, 128, 8
    $region9: #{tpu_custom_call.1} parent=1 // pred_fallthru
      _
    // Predicated region
    $region10: #{tpu_custom_call.1} parent=1 // pred_check
      _
    $region11: #{tpu_custom_call.1} parent=1 // pred_check_branch
      %35 = sbr.rel (0) target = $region13
    $region12: #{tpu_custom_call.1} parent=1 // pred_region
      %36 = dma.done [#allocation3], 256
    $region13: #{tpu_custom_call.1} parent=1 // pred_fallthru
      _
    // Predicated region
    $region14: #{tpu_custom_call.1} parent=1 // pred_check
      _
    $region15: #{tpu_custom_call.1} parent=1 // pred_check_branch
      %38 = sbr.rel (0) target = $region17
    $region16: #{tpu_custom_call.1} parent=1 // pred_region
      %39 = dma.done [#allocation6], 256
    $region17: #{tpu_custom_call.1} parent=1 // pred_fallthru
      _
    %v40 = vld [vmem:[#allocation2] sm:$0xff]
    %v41 = vld [vmem:[#allocation2 + $0x8] sm:$0xff]
    %v42 = vld [vmem:[#allocation5] sm:$0xff]
    %v43 = vld [vmem:[#allocation5 + $0x8] sm:$0xff]
    %v44 = vsub.f32 %v42, 0.5
    %v45 = vsub.f32 %v43, 0.5
    %v46 = vmul.f32 %v44, 0.05
    %v47 = vmul.f32 %v45, 0.05
    %v48 = vsub.f32 %v40, %v46
    %v49 = vsub.f32 %v41, %v47
    %v50 = vlaneseq
    %v51 = vshrl.u32 %v50, 7
    %v52 = vadd.s32 %v51, 8
    %v53 = vlaneseq
    %v54 = vand.u32 %v53, 127
    %vm55 = vcmp.gt.s32.totalorder %v54, %v51
    %vm56 = vcmp.gt.s32.totalorder %v54, %v52
    %v57 = vlaneseq
    %v58 = vshrl.u32 %v57, 7
    %v59 = vsub.s32 0, %v58
    %v60 = vrot.slane %v48, %v59
    %62 = vbcast.lane.b32.xlu0 %v60, 256
    %v63 = vpop.permute.xlu0 %62
    %s65 = sor.u32 256, 8
    %66 = vbcast.lane.b32.xlu0 %v60, %s65
    %v67 = vpop.permute.xlu0 %66
    %v68 = vlaneseq
    %v69 = vshrl.u32 %v68, 7
    %v70 = vsub.s32 1, %v69
    %v71 = vrot.slane %v48, %v70
    %73 = vbcast.lane.b32.xlu0 %v71, 256
    %v74 = vpop.permute.xlu0 %73
    %s76 = sor.u32 256, 8
    %77 = vbcast.lane.b32.xlu0 %v71, %s76
    %v78 = vpop.permute.xlu0 %77
    %v79 = vlaneseq
    %v80 = vshrl.u32 %v79, 7
    %v81 = vsub.s32 2, %v80
    %v82 = vrot.slane %v48, %v81
    %84 = vbcast.lane.b32.xlu0 %v82, 256
    %v85 = vpop.permute.xlu0 %84
    %s87 = sor.u32 256, 8
    %88 = vbcast.lane.b32.xlu0 %v82, %s87
    %v89 = vpop.permute.xlu0 %88
    %v90 = vlaneseq
    %v91 = vshrl.u32 %v90, 7
    %v92 = vsub.s32 3, %v91
    %v93 = vrot.slane %v48, %v92
    %95 = vbcast.lane.b32.xlu0 %v93, 256
    %v96 = vpop.permute.xlu0 %95
    %s98 = sor.u32 256, 8
    %99 = vbcast.lane.b32.xlu0 %v93, %s98
    %v100 = vpop.permute.xlu0 %99
    %v101 = vlaneseq
    %v102 = vshrl.u32 %v101, 7
    %v103 = vsub.s32 4, %v102
    %v104 = vrot.slane %v48, %v103
    %106 = vbcast.lane.b32.xlu0 %v104, 256
    %v107 = vpop.permute.xlu0 %106
    %s109 = sor.u32 256, 8
    %110 = vbcast.lane.b32.xlu0 %v104, %s109
    %v111 = vpop.permute.xlu0 %110
    %v112 = vlaneseq
    %v113 = vshrl.u32 %v112, 7
    %v114 = vsub.s32 5, %v113
    %v115 = vrot.slane %v48, %v114
    %117 = vbcast.lane.b32.xlu0 %v115, 256
    %v118 = vpop.permute.xlu0 %117
    %s120 = sor.u32 256, 8
    %121 = vbcast.lane.b32.xlu0 %v115, %s120
    %v122 = vpop.permute.xlu0 %121
    %v123 = vlaneseq
    %v124 = vshrl.u32 %v123, 7
    %v125 = vsub.s32 6, %v124
    %v126 = vrot.slane %v48, %v125
    %128 = vbcast.lane.b32.xlu0 %v126, 256
    %v129 = vpop.permute.xlu0 %128
    %s131 = sor.u32 256, 8
    %132 = vbcast.lane.b32.xlu0 %v126, %s131
    %v133 = vpop.permute.xlu0 %132
    %v134 = vlaneseq
    %v135 = vshrl.u32 %v134, 7
    %v136 = vsub.s32 7, %v135
    %v137 = vrot.slane %v48, %v136
    %139 = vbcast.lane.b32.xlu0 %v137, 256
    %v140 = vpop.permute.xlu0 %139
    %s142 = sor.u32 256, 8
    %143 = vbcast.lane.b32.xlu0 %v137, %s142
    %v144 = vpop.permute.xlu0 %143
    %v145 = vlaneseq
    %v146 = vshrl.u32 %v145, 7
    %v147 = vsub.s32 0, %v146
    %v148 = vrot.slane %v49, %v147
    %150 = vbcast.lane.b32.xlu0 %v148, 256
    %v151 = vpop.permute.xlu0 %150
    %s153 = sor.u32 256, 8
    %154 = vbcast.lane.b32.xlu0 %v148, %s153
    %v155 = vpop.permute.xlu0 %154
    %v156 = vlaneseq
    %v157 = vshrl.u32 %v156, 7
    %v158 = vsub.s32 1, %v157
    %v159 = vrot.slane %v49, %v158
    %161 = vbcast.lane.b32.xlu0 %v159, 256
    %v162 = vpop.permute.xlu0 %161
    %s164 = sor.u32 256, 8
    %165 = vbcast.lane.b32.xlu0 %v159, %s164
    %v166 = vpop.permute.xlu0 %165
    %v167 = vlaneseq
    %v168 = vshrl.u32 %v167, 7
    %v169 = vsub.s32 2, %v168
    %v170 = vrot.slane %v49, %v169
    %172 = vbcast.lane.b32.xlu0 %v170, 256
    %v173 = vpop.permute.xlu0 %172
    %s175 = sor.u32 256, 8
    %176 = vbcast.lane.b32.xlu0 %v170, %s175
    %v177 = vpop.permute.xlu0 %176
    %v178 = vlaneseq
    %v179 = vshrl.u32 %v178, 7
    %v180 = vsub.s32 3, %v179
    %v181 = vrot.slane %v49, %v180
    %183 = vbcast.lane.b32.xlu0 %v181, 256
    %v184 = vpop.permute.xlu0 %183
    %s186 = sor.u32 256, 8
    %187 = vbcast.lane.b32.xlu0 %v181, %s186
    %v188 = vpop.permute.xlu0 %187
    %v189 = vlaneseq
    %v190 = vshrl.u32 %v189, 7
    %v191 = vsub.s32 4, %v190
    %v192 = vrot.slane %v49, %v191
    %194 = vbcast.lane.b32.xlu0 %v192, 256
    %v195 = vpop.permute.xlu0 %194
    %s197 = sor.u32 256, 8
    %198 = vbcast.lane.b32.xlu0 %v192, %s197
    %v199 = vpop.permute.xlu0 %198
    %v200 = vlaneseq
    %v201 = vshrl.u32 %v200, 7
    %v202 = vsub.s32 5, %v201
    %v203 = vrot.slane %v49, %v202
    %205 = vbcast.lane.b32.xlu0 %v203, 256
    %v206 = vpop.permute.xlu0 %205
    %s208 = sor.u32 256, 8
    %209 = vbcast.lane.b32.xlu0 %v203, %s208
    %v210 = vpop.permute.xlu0 %209
    %v211 = vlaneseq
    %v212 = vshrl.u32 %v211, 7
    %v213 = vsub.s32 6, %v212
    %v214 = vrot.slane %v49, %v213
    %216 = vbcast.lane.b32.xlu0 %v214, 256
    %v217 = vpop.permute.xlu0 %216
    %s219 = sor.u32 256, 8
    %220 = vbcast.lane.b32.xlu0 %v214, %s219
    %v221 = vpop.permute.xlu0 %220
    %v222 = vlaneseq
    %v223 = vshrl.u32 %v222, 7
    %v224 = vsub.s32 7, %v223
    %v225 = vrot.slane %v49, %v224
    %227 = vbcast.lane.b32.xlu0 %v225, 256
    %v228 = vpop.permute.xlu0 %227
    %s230 = sor.u32 256, 8
    %231 = vbcast.lane.b32.xlu0 %v225, %s230
    %v232 = vpop.permute.xlu0 %231
    %v235 = vcombine.high %v48, %v48
    %v237 = vunpack.c.l.s4 1966171168
    %v238 = vunpack.c.0.s8 %v237
    %v239 = vlaneseq
    %v240 = vshrl.u32 %v239, 7
    %v241 = vsub.s32 %v238, %v240
    %v242 = vrot.slane %v48, %v241
    %v244 = vunpack.c.l.s4 1966171168
    %v245 = vunpack.c.0.s8 %v244
    %v246 = vlaneseq
    %v247 = vshrl.u32 %v246, 7
    %v248 = vsub.s32 %v245, %v247
    %v249 = vrot.slane %v235, %v248
    %v250 = vcombine.high %v242, %v242
    %v251 = vcombine.high %v249, %v249
    %v253 = vunpack.c.l.s4 1966171168
    %v254 = vunpack.c.0.s8 %v253
    %v255 = vlaneseq
    %v256 = vshrl.u32 %v255, 7
    %v257 = vsub.s32 %v254, %v256
    %v258 = vrot.slane %v242, %v257
    %v260 = vunpack.c.l.s4 1966171168
    %v261 = vunpack.c.0.s8 %v260
    %v262 = vlaneseq
    %v263 = vshrl.u32 %v262, 7
    %v264 = vsub.s32 %v261, %v263
    %v265 = vrot.slane %v249, %v264
    %v267 = vunpack.c.l.s4 1966171168
    %v268 = vunpack.c.0.s8 %v267
    %v269 = vlaneseq
    %v270 = vshrl.u32 %v269, 7
    %v271 = vsub.s32 %v268, %v270
    %v272 = vrot.slane %v250, %v271
    %v274 = vunpack.c.l.s4 1966171168
    %v275 = vunpack.c.0.s8 %v274
    %v276 = vlaneseq
    %v277 = vshrl.u32 %v276, 7
    %v278 = vsub.s32 %v275, %v277
    %v279 = vrot.slane %v251, %v278
    %v280 = vcombine.high %v258, %v258
    %v281 = vcombine.high %v265, %v265
    %v282 = vcombine.high %v272, %v272
    %v283 = vcombine.high %v279, %v279
    %v284 = vcombine.high %v49, %v49
    %v286 = vunpack.c.l.s4 1966171168
    %v287 = vunpack.c.0.s8 %v286
    %v288 = vlaneseq
    %v289 = vshrl.u32 %v288, 7
    %v290 = vsub.s32 %v287, %v289
    %v291 = vrot.slane %v49, %v290
    %v293 = vunpack.c.l.s4 1966171168
    %v294 = vunpack.c.0.s8 %v293
    %v295 = vlaneseq
    %v296 = vshrl.u32 %v295, 7
    %v297 = vsub.s32 %v294, %v296
    %v298 = vrot.slane %v284, %v297
    %v299 = vcombine.high %v291, %v291
    %v300 = vcombine.high %v298, %v298
    %v302 = vunpack.c.l.s4 1966171168
    %v303 = vunpack.c.0.s8 %v302
    %v304 = vlaneseq
    %v305 = vshrl.u32 %v304, 7
    %v306 = vsub.s32 %v303, %v305
    %v307 = vrot.slane %v291, %v306
    %v309 = vunpack.c.l.s4 1966171168
    %v310 = vunpack.c.0.s8 %v309
    %v311 = vlaneseq
    %v312 = vshrl.u32 %v311, 7
    %v313 = vsub.s32 %v310, %v312
    %v314 = vrot.slane %v298, %v313
    %v316 = vunpack.c.l.s4 1966171168
    %v317 = vunpack.c.0.s8 %v316
    %v318 = vlaneseq
    %v319 = vshrl.u32 %v318, 7
    %v320 = vsub.s32 %v317, %v319
    %v321 = vrot.slane %v299, %v320
    %v323 = vunpack.c.l.s4 1966171168
    %v324 = vunpack.c.0.s8 %v323
    %v325 = vlaneseq
    %v326 = vshrl.u32 %v325, 7
    %v327 = vsub.s32 %v324, %v326
    %v328 = vrot.slane %v300, %v327
    %v329 = vcombine.high %v307, %v307
    %v330 = vcombine.high %v314, %v314
    %v331 = vcombine.high %v321, %v321
    %v332 = vcombine.high %v328, %v328
    %v333 = vlaneseq
    %v334 = vshrl.u32 %v333, 7
    %v335 = vsub.s32 0, %v334
    %v336 = vrot.slane %v258, %v335
    %v337 = vlaneseq
    %v338 = vshrl.u32 %v337, 7
    %v339 = vsub.s32 0, %v338
    %v340 = vrot.slane %v272, %v339
    %v341 = vlaneseq
    %v342 = vshrl.u32 %v341, 7
    %v343 = vsub.s32 0, %v342
    %v344 = vrot.slane %v280, %v343
    %v345 = vlaneseq
    %v346 = vshrl.u32 %v345, 7
    %v347 = vsub.s32 0, %v346
    %v348 = vrot.slane %v282, %v347
    %v349 = vlaneseq
    %v350 = vshrl.u32 %v349, 7
    %v351 = vsub.s32 0, %v350
    %v352 = vrot.slane %v265, %v351
    %v353 = vlaneseq
    %v354 = vshrl.u32 %v353, 7
    %v355 = vsub.s32 0, %v354
    %v356 = vrot.slane %v279, %v355
    %v357 = vlaneseq
    %v358 = vshrl.u32 %v357, 7
    %v359 = vsub.s32 0, %v358
    %v360 = vrot.slane %v281, %v359
    %v361 = vlaneseq
    %v362 = vshrl.u32 %v361, 7
    %v363 = vsub.s32 0, %v362
    %v364 = vrot.slane %v283, %v363
    %v365 = vlaneseq
    %v366 = vshrl.u32 %v365, 7
    %v367 = vsub.s32 0, %v366
    %v368 = vrot.slane %v307, %v367
    %v369 = vlaneseq
    %v370 = vshrl.u32 %v369, 7
    %v371 = vsub.s32 0, %v370
    %v372 = vrot.slane %v321, %v371
    %v373 = vlaneseq
    %v374 = vshrl.u32 %v373, 7
    %v375 = vsub.s32 0, %v374
    %v376 = vrot.slane %v329, %v375
    %v377 = vlaneseq
    %v378 = vshrl.u32 %v377, 7
    %v379 = vsub.s32 0, %v378
    %v380 = vrot.slane %v331, %v379
    %v381 = vlaneseq
    %v382 = vshrl.u32 %v381, 7
    %v383 = vsub.s32 0, %v382
    %v384 = vrot.slane %v314, %v383
    %v385 = vlaneseq
    %v386 = vshrl.u32 %v385, 7
    %v387 = vsub.s32 0, %v386
    %v388 = vrot.slane %v328, %v387
    %v389 = vlaneseq
    %v390 = vshrl.u32 %v389, 7
    %v391 = vsub.s32 0, %v390
    %v392 = vrot.slane %v330, %v391
    %v393 = vlaneseq
    %v394 = vshrl.u32 %v393, 7
    %v395 = vsub.s32 0, %v394
    %v396 = vrot.slane %v332, %v395
    %vm413 = vcmp.gt.f32.partialorder %v336, %v63
    %vm414 = vcmp.gt.f32.partialorder %v336, %v67
    %vm415 = vcmp.gt.f32.partialorder %v340, %v74
    %vm416 = vcmp.gt.f32.partialorder %v340, %v78
    %vm417 = vcmp.gt.f32.partialorder %v344, %v85
    %vm418 = vcmp.gt.f32.partialorder %v344, %v89
    %vm419 = vcmp.gt.f32.partialorder %v348, %v96
    %vm420 = vcmp.gt.f32.partialorder %v348, %v100
    %vm421 = vcmp.gt.f32.partialorder %v352, %v107
    %vm422 = vcmp.gt.f32.partialorder %v352, %v111
    %vm423 = vcmp.gt.f32.partialorder %v356, %v118
    %vm424 = vcmp.gt.f32.partialorder %v356, %v122
    %vm425 = vcmp.gt.f32.partialorder %v360, %v129
    %vm426 = vcmp.gt.f32.partialorder %v360, %v133
    %vm427 = vcmp.gt.f32.partialorder %v364, %v140
    %vm428 = vcmp.gt.f32.partialorder %v364, %v144
    %vm429 = vcmp.gt.f32.partialorder %v368, %v151
    %vm430 = vcmp.gt.f32.partialorder %v368, %v155
    %vm431 = vcmp.gt.f32.partialorder %v372, %v162
    %vm432 = vcmp.gt.f32.partialorder %v372, %v166
    %vm433 = vcmp.gt.f32.partialorder %v376, %v173
    %vm434 = vcmp.gt.f32.partialorder %v376, %v177
    %vm435 = vcmp.gt.f32.partialorder %v380, %v184
    %vm436 = vcmp.gt.f32.partialorder %v380, %v188
    %vm437 = vcmp.gt.f32.partialorder %v384, %v195
    %vm438 = vcmp.gt.f32.partialorder %v384, %v199
    %vm439 = vcmp.gt.f32.partialorder %v388, %v206
    %vm440 = vcmp.gt.f32.partialorder %v388, %v210
    %vm441 = vcmp.gt.f32.partialorder %v392, %v217
    %vm442 = vcmp.gt.f32.partialorder %v392, %v221
    %vm443 = vcmp.gt.f32.partialorder %v396, %v228
    %vm444 = vcmp.gt.f32.partialorder %v396, %v232
    %vm445 = vcmp.eq.f32.partialorder %v336, %v63
    %vm446 = vcmp.eq.f32.partialorder %v336, %v67
    %vm447 = vcmp.eq.f32.partialorder %v340, %v74
    %vm448 = vcmp.eq.f32.partialorder %v340, %v78
    %vm449 = vcmp.eq.f32.partialorder %v344, %v85
    %vm450 = vcmp.eq.f32.partialorder %v344, %v89
    %vm451 = vcmp.eq.f32.partialorder %v348, %v96
    %vm452 = vcmp.eq.f32.partialorder %v348, %v100
    %vm453 = vcmp.eq.f32.partialorder %v352, %v107
    %vm454 = vcmp.eq.f32.partialorder %v352, %v111
    %vm455 = vcmp.eq.f32.partialorder %v356, %v118
    %vm456 = vcmp.eq.f32.partialorder %v356, %v122
    %vm457 = vcmp.eq.f32.partialorder %v360, %v129
    %vm458 = vcmp.eq.f32.partialorder %v360, %v133
    %vm459 = vcmp.eq.f32.partialorder %v364, %v140
    %vm460 = vcmp.eq.f32.partialorder %v364, %v144
    %vm461 = vcmp.eq.f32.partialorder %v368, %v151
    %vm462 = vcmp.eq.f32.partialorder %v368, %v155
    %vm463 = vcmp.eq.f32.partialorder %v372, %v162
    %vm464 = vcmp.eq.f32.partialorder %v372, %v166
    %vm465 = vcmp.eq.f32.partialorder %v376, %v173
    %vm466 = vcmp.eq.f32.partialorder %v376, %v177
    %vm467 = vcmp.eq.f32.partialorder %v380, %v184
    %vm468 = vcmp.eq.f32.partialorder %v380, %v188
    %vm469 = vcmp.eq.f32.partialorder %v384, %v195
    %vm470 = vcmp.eq.f32.partialorder %v384, %v199
    %vm471 = vcmp.eq.f32.partialorder %v388, %v206
    %vm472 = vcmp.eq.f32.partialorder %v388, %v210
    %vm473 = vcmp.eq.f32.partialorder %v392, %v217
    %vm474 = vcmp.eq.f32.partialorder %v392, %v221
    %vm475 = vcmp.eq.f32.partialorder %v396, %v228
    %vm476 = vcmp.eq.f32.partialorder %v396, %v232
    %v477 = vsel %vm55, 1, 0
    %v478 = vsel %vm56, 1, 0
    %vm479 = vcmp.eq.s32.totalorder %v477, 1
    %vm480 = vcmp.eq.s32.totalorder %v478, 1
    %vm481 = vmand %vm445, %vm479
    %vm482 = vmand %vm446, %vm480
    %vm483 = vmand %vm447, %vm479
    %vm484 = vmand %vm448, %vm480
    %vm485 = vmand %vm449, %vm479
    %vm486 = vmand %vm450, %vm480
    %vm487 = vmand %vm451, %vm479
    %vm488 = vmand %vm452, %vm480
    %vm489 = vmand %vm453, %vm479
    %vm490 = vmand %vm454, %vm480
    %vm491 = vmand %vm455, %vm479
    %vm492 = vmand %vm456, %vm480
    %vm493 = vmand %vm457, %vm479
    %vm494 = vmand %vm458, %vm480
    %vm495 = vmand %vm459, %vm479
    %vm496 = vmand %vm460, %vm480
    %vm497 = vmand %vm461, %vm479
    %vm498 = vmand %vm462, %vm480
    %vm499 = vmand %vm463, %vm479
    %vm500 = vmand %vm464, %vm480
    %vm501 = vmand %vm465, %vm479
    %vm502 = vmand %vm466, %vm480
    %vm503 = vmand %vm467, %vm479
    %vm504 = vmand %vm468, %vm480
    %vm505 = vmand %vm469, %vm479
    %vm506 = vmand %vm470, %vm480
    %vm507 = vmand %vm471, %vm479
    %vm508 = vmand %vm472, %vm480
    %vm509 = vmand %vm473, %vm479
    %vm510 = vmand %vm474, %vm480
    %vm511 = vmand %vm475, %vm479
    %vm512 = vmand %vm476, %vm480
    %vm513 = vmor %vm413, %vm481
    %vm514 = vmor %vm414, %vm482
    %vm515 = vmor %vm415, %vm483
    %vm516 = vmor %vm416, %vm484
    %vm517 = vmor %vm417, %vm485
    %vm518 = vmor %vm418, %vm486
    %vm519 = vmor %vm419, %vm487
    %vm520 = vmor %vm420, %vm488
    %vm521 = vmor %vm421, %vm489
    %vm522 = vmor %vm422, %vm490
    %vm523 = vmor %vm423, %vm491
    %vm524 = vmor %vm424, %vm492
    %vm525 = vmor %vm425, %vm493
    %vm526 = vmor %vm426, %vm494
    %vm527 = vmor %vm427, %vm495
    %vm528 = vmor %vm428, %vm496
    %vm529 = vmor %vm429, %vm497
    %vm530 = vmor %vm430, %vm498
    %vm531 = vmor %vm431, %vm499
    %vm532 = vmor %vm432, %vm500
    %vm533 = vmor %vm433, %vm501
    %vm534 = vmor %vm434, %vm502
    %vm535 = vmor %vm435, %vm503
    %vm536 = vmor %vm436, %vm504
    %vm537 = vmor %vm437, %vm505
    %vm538 = vmor %vm438, %vm506
    %vm539 = vmor %vm439, %vm507
    %vm540 = vmor %vm440, %vm508
    %vm541 = vmor %vm441, %vm509
    %vm542 = vmor %vm442, %vm510
    %vm543 = vmor %vm443, %vm511
    %vm544 = vmor %vm444, %vm512
    %v545 = vsel %vm513, 1, 0
    %v546 = vsel %vm514, 1, 0
    %v547 = vsel %vm515, 1, 0
    %v548 = vsel %vm516, 1, 0
    %v549 = vsel %vm517, 1, 0
    %v550 = vsel %vm518, 1, 0
    %v551 = vsel %vm519, 1, 0
    %v552 = vsel %vm520, 1, 0
    %v553 = vsel %vm521, 1, 0
    %v554 = vsel %vm522, 1, 0
    %v555 = vsel %vm523, 1, 0
    %v556 = vsel %vm524, 1, 0
    %v557 = vsel %vm525, 1, 0
    %v558 = vsel %vm526, 1, 0
    %v559 = vsel %vm527, 1, 0
    %v560 = vsel %vm528, 1, 0
    %v561 = vsel %vm529, 1, 0
    %v562 = vsel %vm530, 1, 0
    %v563 = vsel %vm531, 1, 0
    %v564 = vsel %vm532, 1, 0
    %v565 = vsel %vm533, 1, 0
    %v566 = vsel %vm534, 1, 0
    %v567 = vsel %vm535, 1, 0
    %v568 = vsel %vm536, 1, 0
    %v569 = vsel %vm537, 1, 0
    %v570 = vsel %vm538, 1, 0
    %v571 = vsel %vm539, 1, 0
    %v572 = vsel %vm540, 1, 0
    %v573 = vsel %vm541, 1, 0
    %v574 = vsel %vm542, 1, 0
    %v575 = vsel %vm543, 1, 0
    %v576 = vsel %vm544, 1, 0
    %v577 = vcvt.s32.f32 %v545
    %v578 = vcvt.s32.f32 %v546
    %v579 = vcvt.s32.f32 %v547
    %v580 = vcvt.s32.f32 %v548
    %v581 = vcvt.s32.f32 %v549
    %v582 = vcvt.s32.f32 %v550
    %v583 = vcvt.s32.f32 %v551
    %v584 = vcvt.s32.f32 %v552
    %v585 = vcvt.s32.f32 %v553
    %v586 = vcvt.s32.f32 %v554
    %v587 = vcvt.s32.f32 %v555
    %v588 = vcvt.s32.f32 %v556
    %v589 = vcvt.s32.f32 %v557
    %v590 = vcvt.s32.f32 %v558
    %v591 = vcvt.s32.f32 %v559
    %v592 = vcvt.s32.f32 %v560
    %v593 = vcvt.s32.f32 %v561
    %v594 = vcvt.s32.f32 %v562
    %v595 = vcvt.s32.f32 %v563
    %v596 = vcvt.s32.f32 %v564
    %v597 = vcvt.s32.f32 %v565
    %v598 = vcvt.s32.f32 %v566
    %v599 = vcvt.s32.f32 %v567
    %v600 = vcvt.s32.f32 %v568
    %v601 = vcvt.s32.f32 %v569
    %v602 = vcvt.s32.f32 %v570
    %v603 = vcvt.s32.f32 %v571
    %v604 = vcvt.s32.f32 %v572
    %v605 = vcvt.s32.f32 %v573
    %v606 = vcvt.s32.f32 %v574
    %v607 = vcvt.s32.f32 %v575
    %v608 = vcvt.s32.f32 %v576
    %vm609 = vcmask 130048
    %v610 = vsel %vm609, %v577, 0.0
    %611 = vadd.xlane.f32.xlu0 %v610
    %v612 = vpop.xlane.xlu0 %611
    %v613 = vsel %vm609, %v578, 0.0
    %614 = vadd.xlane.f32.xlu0 %v613
    %v615 = vpop.xlane.xlu0 %614
    %v616 = vsel %vm609, %v579, 0.0
    %617 = vadd.xlane.f32.xlu0 %v616
    %v618 = vpop.xlane.xlu0 %617
    %v619 = vsel %vm609, %v580, 0.0
    %620 = vadd.xlane.f32.xlu0 %v619
    %v621 = vpop.xlane.xlu0 %620
    %v622 = vsel %vm609, %v581, 0.0
    %623 = vadd.xlane.f32.xlu0 %v622
    %v624 = vpop.xlane.xlu0 %623
    %v625 = vsel %vm609, %v582, 0.0
    %626 = vadd.xlane.f32.xlu0 %v625
    %v627 = vpop.xlane.xlu0 %626
    %v628 = vsel %vm609, %v583, 0.0
    %629 = vadd.xlane.f32.xlu0 %v628
    %v630 = vpop.xlane.xlu0 %629
    %v631 = vsel %vm609, %v584, 0.0
    %632 = vadd.xlane.f32.xlu0 %v631
    %v633 = vpop.xlane.xlu0 %632
    %v634 = vsel %vm609, %v585, 0.0
    %635 = vadd.xlane.f32.xlu0 %v634
    %v636 = vpop.xlane.xlu0 %635
    %v637 = vsel %vm609, %v586, 0.0
    %638 = vadd.xlane.f32.xlu0 %v637
    %v639 = vpop.xlane.xlu0 %638
    %v640 = vsel %vm609, %v587, 0.0
    %641 = vadd.xlane.f32.xlu0 %v640
    %v642 = vpop.xlane.xlu0 %641
    %v643 = vsel %vm609, %v588, 0.0
    %644 = vadd.xlane.f32.xlu0 %v643
    %v645 = vpop.xlane.xlu0 %644
    %v646 = vsel %vm609, %v589, 0.0
    %647 = vadd.xlane.f32.xlu0 %v646
    %v648 = vpop.xlane.xlu0 %647
    %v649 = vsel %vm609, %v590, 0.0
    %650 = vadd.xlane.f32.xlu0 %v649
    %v651 = vpop.xlane.xlu0 %650
    %v652 = vsel %vm609, %v591, 0.0
    %653 = vadd.xlane.f32.xlu0 %v652
    %v654 = vpop.xlane.xlu0 %653
    %v655 = vsel %vm609, %v592, 0.0
    %656 = vadd.xlane.f32.xlu0 %v655
    %v657 = vpop.xlane.xlu0 %656
    %v658 = vsel %vm609, %v593, 0.0
    %659 = vadd.xlane.f32.xlu0 %v658
    %v660 = vpop.xlane.xlu0 %659
    %v661 = vsel %vm609, %v594, 0.0
    %662 = vadd.xlane.f32.xlu0 %v661
    %v663 = vpop.xlane.xlu0 %662
    %v664 = vsel %vm609, %v595, 0.0
    %665 = vadd.xlane.f32.xlu0 %v664
    %v666 = vpop.xlane.xlu0 %665
    %v667 = vsel %vm609, %v596, 0.0
    %668 = vadd.xlane.f32.xlu0 %v667
    %v669 = vpop.xlane.xlu0 %668
    %v670 = vsel %vm609, %v597, 0.0
    %671 = vadd.xlane.f32.xlu0 %v670
    %v672 = vpop.xlane.xlu0 %671
    %v673 = vsel %vm609, %v598, 0.0
    %674 = vadd.xlane.f32.xlu0 %v673
    %v675 = vpop.xlane.xlu0 %674
    %v676 = vsel %vm609, %v599, 0.0
    %677 = vadd.xlane.f32.xlu0 %v676
    %v678 = vpop.xlane.xlu0 %677
    %v679 = vsel %vm609, %v600, 0.0
    %680 = vadd.xlane.f32.xlu0 %v679
    %v681 = vpop.xlane.xlu0 %680
    %v682 = vsel %vm609, %v601, 0.0
    %683 = vadd.xlane.f32.xlu0 %v682
    %v684 = vpop.xlane.xlu0 %683
    %v685 = vsel %vm609, %v602, 0.0
    %686 = vadd.xlane.f32.xlu0 %v685
    %v687 = vpop.xlane.xlu0 %686
    %v688 = vsel %vm609, %v603, 0.0
    %689 = vadd.xlane.f32.xlu0 %v688
    %v690 = vpop.xlane.xlu0 %689
    %v691 = vsel %vm609, %v604, 0.0
    %692 = vadd.xlane.f32.xlu0 %v691
    %v693 = vpop.xlane.xlu0 %692
    %v694 = vsel %vm609, %v605, 0.0
    %695 = vadd.xlane.f32.xlu0 %v694
    %v696 = vpop.xlane.xlu0 %695
    %v697 = vsel %vm609, %v606, 0.0
    %698 = vadd.xlane.f32.xlu0 %v697
    %v699 = vpop.xlane.xlu0 %698
    %v700 = vsel %vm609, %v607, 0.0
    %701 = vadd.xlane.f32.xlu0 %v700
    %v702 = vpop.xlane.xlu0 %701
    %v703 = vsel %vm609, %v608, 0.0
    %704 = vadd.xlane.f32.xlu0 %v703
    %v705 = vpop.xlane.xlu0 %704
    %v706 = vadd.f32 %v612, 1.0
    %v707 = vadd.f32 %v615, 1.0
    %v708 = vadd.f32 %v618, 1.0
    %v709 = vadd.f32 %v621, 1.0
    %v710 = vadd.f32 %v624, 1.0
    %v711 = vadd.f32 %v627, 1.0
    %v712 = vadd.f32 %v630, 1.0
    %v713 = vadd.f32 %v633, 1.0
    %v714 = vadd.f32 %v636, 1.0
    %v715 = vadd.f32 %v639, 1.0
    %v716 = vadd.f32 %v642, 1.0
    %v717 = vadd.f32 %v645, 1.0
    %v718 = vadd.f32 %v648, 1.0
    %v719 = vadd.f32 %v651, 1.0
    %v720 = vadd.f32 %v654, 1.0
    %v721 = vadd.f32 %v657, 1.0
    %v722 = vadd.f32 %v660, 1.0
    %v723 = vadd.f32 %v663, 1.0
    %v724 = vadd.f32 %v666, 1.0
    %v725 = vadd.f32 %v669, 1.0
    %v726 = vadd.f32 %v672, 1.0
    %v727 = vadd.f32 %v675, 1.0
    %v728 = vadd.f32 %v678, 1.0
    %v729 = vadd.f32 %v681, 1.0
    %v730 = vadd.f32 %v684, 1.0
    %v731 = vadd.f32 %v687, 1.0
    %v732 = vadd.f32 %v690, 1.0
    %v733 = vadd.f32 %v693, 1.0
    %v734 = vadd.f32 %v696, 1.0
    %v735 = vadd.f32 %v699, 1.0
    %v736 = vadd.f32 %v702, 1.0
    %v737 = vadd.f32 %v705, 1.0
    %v738 = vrcp.pop 16.0
    %v739 = vmul.f32 %v706, %v738
    %v740 = vmul.f32 %v707, %v738
    %v741 = vmul.f32 %v708, %v738
    %v742 = vmul.f32 %v709, %v738
    %v743 = vmul.f32 %v710, %v738
    %v744 = vmul.f32 %v711, %v738
    %v745 = vmul.f32 %v712, %v738
    %v746 = vmul.f32 %v713, %v738
    %v747 = vmul.f32 %v714, %v738
    %v748 = vmul.f32 %v715, %v738
    %v749 = vmul.f32 %v716, %v738
    %v750 = vmul.f32 %v717, %v738
    %v751 = vmul.f32 %v718, %v738
    %v752 = vmul.f32 %v719, %v738
    %v753 = vmul.f32 %v720, %v738
    %v754 = vmul.f32 %v721, %v738
    %v755 = vmul.f32 %v722, %v738
    %v756 = vmul.f32 %v723, %v738
    %v757 = vmul.f32 %v724, %v738
    %v758 = vmul.f32 %v725, %v738
    %v759 = vmul.f32 %v726, %v738
    %v760 = vmul.f32 %v727, %v738
    %v761 = vmul.f32 %v728, %v738
    %v762 = vmul.f32 %v729, %v738
    %v763 = vmul.f32 %v730, %v738
    %v764 = vmul.f32 %v731, %v738
    %v765 = vmul.f32 %v732, %v738
    %v766 = vmul.f32 %v733, %v738
    %v767 = vmul.f32 %v734, %v738
    %v768 = vmul.f32 %v735, %v738
    %v769 = vmul.f32 %v736, %v738
    %v770 = vmul.f32 %v737, %v738
    %v771 = vmul.f32 %v42, 2.0
    %v772 = vmul.f32 %v43, 2.0
    %v805 = vlaneseq
    %v806 = vshrl.u32 %v805, 7
    %v807 = vsub.s32 %v54, %v806
    %v808 = vrot.slane %v739, %v807
    %v809 = vadd.s32 %v54, 4294967288
    %v810 = vlaneseq
    %v811 = vshrl.u32 %v810, 7
    %v812 = vsub.s32 %v809, %v811
    %v813 = vrot.slane %v740, %v812
    %vm814 = vcmask 130112
    %v815 = vsel %vm814, %v813, %v808
    %v816 = vlaneseq
    %v817 = vshrl.u32 %v816, 7
    %v818 = vsub.s32 %v54, %v817
    %v819 = vrot.slane %v741, %v818
    %v820 = vlaneseq
    %v821 = vshrl.u32 %v820, 7
    %v822 = vsub.s32 %v809, %v821
    %v823 = vrot.slane %v742, %v822
    %v824 = vsel %vm814, %v823, %v819
    %v825 = vlaneseq
    %v826 = vshrl.u32 %v825, 7
    %v827 = vsub.s32 %v54, %v826
    %v828 = vrot.slane %v743, %v827
    %v829 = vlaneseq
    %v830 = vshrl.u32 %v829, 7
    %v831 = vsub.s32 %v809, %v830
    %v832 = vrot.slane %v744, %v831
    %v833 = vsel %vm814, %v832, %v828
    %v834 = vlaneseq
    %v835 = vshrl.u32 %v834, 7
    %v836 = vsub.s32 %v54, %v835
    %v837 = vrot.slane %v745, %v836
    %v838 = vlaneseq
    %v839 = vshrl.u32 %v838, 7
    %v840 = vsub.s32 %v809, %v839
    %v841 = vrot.slane %v746, %v840
    %v842 = vsel %vm814, %v841, %v837
    %v843 = vlaneseq
    %v844 = vshrl.u32 %v843, 7
    %v845 = vsub.s32 %v54, %v844
    %v846 = vrot.slane %v747, %v845
    %v847 = vlaneseq
    %v848 = vshrl.u32 %v847, 7
    %v849 = vsub.s32 %v809, %v848
    %v850 = vrot.slane %v748, %v849
    %v851 = vsel %vm814, %v850, %v846
    %v852 = vlaneseq
    %v853 = vshrl.u32 %v852, 7
    %v854 = vsub.s32 %v54, %v853
    %v855 = vrot.slane %v749, %v854
    %v856 = vlaneseq
    %v857 = vshrl.u32 %v856, 7
    %v858 = vsub.s32 %v809, %v857
    %v859 = vrot.slane %v750, %v858
    %v860 = vsel %vm814, %v859, %v855
    %v861 = vlaneseq
    %v862 = vshrl.u32 %v861, 7
    %v863 = vsub.s32 %v54, %v862
    %v864 = vrot.slane %v751, %v863
    %v865 = vlaneseq
    %v866 = vshrl.u32 %v865, 7
    %v867 = vsub.s32 %v809, %v866
    %v868 = vrot.slane %v752, %v867
    %v869 = vsel %vm814, %v868, %v864
    %v870 = vlaneseq
    %v871 = vshrl.u32 %v870, 7
    %v872 = vsub.s32 %v54, %v871
    %v873 = vrot.slane %v753, %v872
    %v874 = vlaneseq
    %v875 = vshrl.u32 %v874, 7
    %v876 = vsub.s32 %v809, %v875
    %v877 = vrot.slane %v754, %v876
    %v878 = vsel %vm814, %v877, %v873
    %v879 = vlaneseq
    %v880 = vshrl.u32 %v879, 7
    %v881 = vsub.s32 %v54, %v880
    %v882 = vrot.slane %v755, %v881
    %v883 = vlaneseq
    %v884 = vshrl.u32 %v883, 7
    %v885 = vsub.s32 %v809, %v884
    %v886 = vrot.slane %v756, %v885
    %v887 = vsel %vm814, %v886, %v882
    %v888 = vlaneseq
    %v889 = vshrl.u32 %v888, 7
    %v890 = vsub.s32 %v54, %v889
    %v891 = vrot.slane %v757, %v890
    %v892 = vlaneseq
    %v893 = vshrl.u32 %v892, 7
    %v894 = vsub.s32 %v809, %v893
    %v895 = vrot.slane %v758, %v894
    %v896 = vsel %vm814, %v895, %v891
    %v897 = vlaneseq
    %v898 = vshrl.u32 %v897, 7
    %v899 = vsub.s32 %v54, %v898
    %v900 = vrot.slane %v759, %v899
    %v901 = vlaneseq
    %v902 = vshrl.u32 %v901, 7
    %v903 = vsub.s32 %v809, %v902
    %v904 = vrot.slane %v760, %v903
    %v905 = vsel %vm814, %v904, %v900
    %v906 = vlaneseq
    %v907 = vshrl.u32 %v906, 7
    %v908 = vsub.s32 %v54, %v907
    %v909 = vrot.slane %v761, %v908
    %v910 = vlaneseq
    %v911 = vshrl.u32 %v910, 7
    %v912 = vsub.s32 %v809, %v911
    %v913 = vrot.slane %v762, %v912
    %v914 = vsel %vm814, %v913, %v909
    %v915 = vlaneseq
    %v916 = vshrl.u32 %v915, 7
    %v917 = vsub.s32 %v54, %v916
    %v918 = vrot.slane %v763, %v917
    %v919 = vlaneseq
    %v920 = vshrl.u32 %v919, 7
    %v921 = vsub.s32 %v809, %v920
    %v922 = vrot.slane %v764, %v921
    %v923 = vsel %vm814, %v922, %v918
    %v924 = vlaneseq
    %v925 = vshrl.u32 %v924, 7
    %v926 = vsub.s32 %v54, %v925
    %v927 = vrot.slane %v765, %v926
    %v928 = vlaneseq
    %v929 = vshrl.u32 %v928, 7
    %v930 = vsub.s32 %v809, %v929
    %v931 = vrot.slane %v766, %v930
    %v932 = vsel %vm814, %v931, %v927
    %v933 = vlaneseq
    %v934 = vshrl.u32 %v933, 7
    %v935 = vsub.s32 %v54, %v934
    %v936 = vrot.slane %v767, %v935
    %v937 = vlaneseq
    %v938 = vshrl.u32 %v937, 7
    %v939 = vsub.s32 %v809, %v938
    %v940 = vrot.slane %v768, %v939
    %v941 = vsel %vm814, %v940, %v936
    %v942 = vlaneseq
    %v943 = vshrl.u32 %v942, 7
    %v944 = vsub.s32 %v54, %v943
    %v945 = vrot.slane %v769, %v944
    %v946 = vlaneseq
    %v947 = vshrl.u32 %v946, 7
    %v948 = vsub.s32 %v809, %v947
    %v949 = vrot.slane %v770, %v948
    %v950 = vsel %vm814, %v949, %v945
    %vm951 = vcmask 1041409
    %v952 = vsel %vm951, %v824, %v815
    %vm953 = vcmask 1042434
    %v954 = vsel %vm953, %v833, %v952
    %vm955 = vcmask 1043459
    %v956 = vsel %vm955, %v842, %v954
    %vm957 = vcmask 1044484
    %v958 = vsel %vm957, %v851, %v956
    %vm959 = vcmask 1045509
    %v960 = vsel %vm959, %v860, %v958
    %vm961 = vcmask 1046534
    %v962 = vsel %vm961, %v869, %v960
    %vm963 = vcmask 1047559
    %v964 = vsel %vm963, %v878, %v962
    %v965 = vsel %vm951, %v896, %v887
    %v966 = vsel %vm953, %v905, %v965
    %v967 = vsel %vm955, %v914, %v966
    %v968 = vsel %vm957, %v923, %v967
    %v969 = vsel %vm959, %v932, %v968
    %v970 = vsel %vm961, %v941, %v969
    %v971 = vsel %vm963, %v950, %v970
    %v974 = vsub.f32 %v771, %v964
    %v975 = vsub.f32 %v772, %v971
    %v976 = vlaneseq
    %v977 = vshrl.u32 %v976, 7
    %v978 = vsub.s32 0, %v977
    %v979 = vrot.slane %v974, %v978
    %981 = vbcast.lane.b32.xlu0 %v979, 256
    %v982 = vpop.permute.xlu0 %981
    %s984 = sor.u32 256, 8
    %985 = vbcast.lane.b32.xlu0 %v979, %s984
    %v986 = vpop.permute.xlu0 %985
    %v987 = vlaneseq
    %v988 = vshrl.u32 %v987, 7
    %v989 = vsub.s32 1, %v988
    %v990 = vrot.slane %v974, %v989
    %992 = vbcast.lane.b32.xlu0 %v990, 256
    %v993 = vpop.permute.xlu0 %992
    %s995 = sor.u32 256, 8
    %996 = vbcast.lane.b32.xlu0 %v990, %s995
    %v997 = vpop.permute.xlu0 %996
    %v998 = vlaneseq
    %v999 = vshrl.u32 %v998, 7
    %v1000 = vsub.s32 2, %v999
    %v1001 = vrot.slane %v974, %v1000
    %1003 = vbcast.lane.b32.xlu0 %v1001, 256
    %v1004 = vpop.permute.xlu0 %1003
    %s1006 = sor.u32 256, 8
    %1007 = vbcast.lane.b32.xlu0 %v1001, %s1006
    %v1008 = vpop.permute.xlu0 %1007
    %v1009 = vlaneseq
    %v1010 = vshrl.u32 %v1009, 7
    %v1011 = vsub.s32 3, %v1010
    %v1012 = vrot.slane %v974, %v1011
    %1014 = vbcast.lane.b32.xlu0 %v1012, 256
    %v1015 = vpop.permute.xlu0 %1014
    %s1017 = sor.u32 256, 8
    %1018 = vbcast.lane.b32.xlu0 %v1012, %s1017
    %v1019 = vpop.permute.xlu0 %1018
    %v1020 = vlaneseq
    %v1021 = vshrl.u32 %v1020, 7
    %v1022 = vsub.s32 4, %v1021
    %v1023 = vrot.slane %v974, %v1022
    %1025 = vbcast.lane.b32.xlu0 %v1023, 256
    %v1026 = vpop.permute.xlu0 %1025
    %s1028 = sor.u32 256, 8
    %1029 = vbcast.lane.b32.xlu0 %v1023, %s1028
    %v1030 = vpop.permute.xlu0 %1029
    %v1031 = vlaneseq
    %v1032 = vshrl.u32 %v1031, 7
    %v1033 = vsub.s32 5, %v1032
    %v1034 = vrot.slane %v974, %v1033
    %1036 = vbcast.lane.b32.xlu0 %v1034, 256
    %v1037 = vpop.permute.xlu0 %1036
    %s1039 = sor.u32 256, 8
    %1040 = vbcast.lane.b32.xlu0 %v1034, %s1039
    %v1041 = vpop.permute.xlu0 %1040
    %v1042 = vlaneseq
    %v1043 = vshrl.u32 %v1042, 7
    %v1044 = vsub.s32 6, %v1043
    %v1045 = vrot.slane %v974, %v1044
    %1047 = vbcast.lane.b32.xlu0 %v1045, 256
    %v1048 = vpop.permute.xlu0 %1047
    %s1050 = sor.u32 256, 8
    %1051 = vbcast.lane.b32.xlu0 %v1045, %s1050
    %v1052 = vpop.permute.xlu0 %1051
    %v1053 = vlaneseq
    %v1054 = vshrl.u32 %v1053, 7
    %v1055 = vsub.s32 7, %v1054
    %v1056 = vrot.slane %v974, %v1055
    %1058 = vbcast.lane.b32.xlu0 %v1056, 256
    %v1059 = vpop.permute.xlu0 %1058
    %s1061 = sor.u32 256, 8
    %1062 = vbcast.lane.b32.xlu0 %v1056, %s1061
    %v1063 = vpop.permute.xlu0 %1062
    %v1064 = vlaneseq
    %v1065 = vshrl.u32 %v1064, 7
    %v1066 = vsub.s32 0, %v1065
    %v1067 = vrot.slane %v975, %v1066
    %1069 = vbcast.lane.b32.xlu0 %v1067, 256
    %v1070 = vpop.permute.xlu0 %1069
    %s1072 = sor.u32 256, 8
    %1073 = vbcast.lane.b32.xlu0 %v1067, %s1072
    %v1074 = vpop.permute.xlu0 %1073
    %v1075 = vlaneseq
    %v1076 = vshrl.u32 %v1075, 7
    %v1077 = vsub.s32 1, %v1076
    %v1078 = vrot.slane %v975, %v1077
    %1080 = vbcast.lane.b32.xlu0 %v1078, 256
    %v1081 = vpop.permute.xlu0 %1080
    %s1083 = sor.u32 256, 8
    %1084 = vbcast.lane.b32.xlu0 %v1078, %s1083
    %v1085 = vpop.permute.xlu0 %1084
    %v1086 = vlaneseq
    %v1087 = vshrl.u32 %v1086, 7
    %v1088 = vsub.s32 2, %v1087
    %v1089 = vrot.slane %v975, %v1088
    %1091 = vbcast.lane.b32.xlu0 %v1089, 256
    %v1092 = vpop.permute.xlu0 %1091
    %s1094 = sor.u32 256, 8
    %1095 = vbcast.lane.b32.xlu0 %v1089, %s1094
    %v1096 = vpop.permute.xlu0 %1095
    %v1097 = vlaneseq
    %v1098 = vshrl.u32 %v1097, 7
    %v1099 = vsub.s32 3, %v1098
    %v1100 = vrot.slane %v975, %v1099
    %1102 = vbcast.lane.b32.xlu0 %v1100, 256
    %v1103 = vpop.permute.xlu0 %1102
    %s1105 = sor.u32 256, 8
    %1106 = vbcast.lane.b32.xlu0 %v1100, %s1105
    %v1107 = vpop.permute.xlu0 %1106
    %v1108 = vlaneseq
    %v1109 = vshrl.u32 %v1108, 7
    %v1110 = vsub.s32 4, %v1109
    %v1111 = vrot.slane %v975, %v1110
    %1113 = vbcast.lane.b32.xlu0 %v1111, 256
    %v1114 = vpop.permute.xlu0 %1113
    %s1116 = sor.u32 256, 8
    %1117 = vbcast.lane.b32.xlu0 %v1111, %s1116
    %v1118 = vpop.permute.xlu0 %1117
    %v1119 = vlaneseq
    %v1120 = vshrl.u32 %v1119, 7
    %v1121 = vsub.s32 5, %v1120
    %v1122 = vrot.slane %v975, %v1121
    %1124 = vbcast.lane.b32.xlu0 %v1122, 256
    %v1125 = vpop.permute.xlu0 %1124
    %s1127 = sor.u32 256, 8
    %1128 = vbcast.lane.b32.xlu0 %v1122, %s1127
    %v1129 = vpop.permute.xlu0 %1128
    %v1130 = vlaneseq
    %v1131 = vshrl.u32 %v1130, 7
    %v1132 = vsub.s32 6, %v1131
    %v1133 = vrot.slane %v975, %v1132
    %1135 = vbcast.lane.b32.xlu0 %v1133, 256
    %v1136 = vpop.permute.xlu0 %1135
    %s1138 = sor.u32 256, 8
    %1139 = vbcast.lane.b32.xlu0 %v1133, %s1138
    %v1140 = vpop.permute.xlu0 %1139
    %v1141 = vlaneseq
    %v1142 = vshrl.u32 %v1141, 7
    %v1143 = vsub.s32 7, %v1142
    %v1144 = vrot.slane %v975, %v1143
    %1146 = vbcast.lane.b32.xlu0 %v1144, 256
    %v1147 = vpop.permute.xlu0 %1146
    %s1149 = sor.u32 256, 8
    %1150 = vbcast.lane.b32.xlu0 %v1144, %s1149
    %v1151 = vpop.permute.xlu0 %1150
    %v1154 = vcombine.high %v974, %v974
    %v1156 = vunpack.c.l.s4 1966171168
    %v1157 = vunpack.c.0.s8 %v1156
    %v1158 = vlaneseq
    %v1159 = vshrl.u32 %v1158, 7
    %v1160 = vsub.s32 %v1157, %v1159
    %v1161 = vrot.slane %v974, %v1160
    %v1163 = vunpack.c.l.s4 1966171168
    %v1164 = vunpack.c.0.s8 %v1163
    %v1165 = vlaneseq
    %v1166 = vshrl.u32 %v1165, 7
    %v1167 = vsub.s32 %v1164, %v1166
    %v1168 = vrot.slane %v1154, %v1167
    %v1169 = vcombine.high %v1161, %v1161
    %v1170 = vcombine.high %v1168, %v1168
    %v1172 = vunpack.c.l.s4 1966171168
    %v1173 = vunpack.c.0.s8 %v1172
    %v1174 = vlaneseq
    %v1175 = vshrl.u32 %v1174, 7
    %v1176 = vsub.s32 %v1173, %v1175
    %v1177 = vrot.slane %v1161, %v1176
    %v1179 = vunpack.c.l.s4 1966171168
    %v1180 = vunpack.c.0.s8 %v1179
    %v1181 = vlaneseq
    %v1182 = vshrl.u32 %v1181, 7
    %v1183 = vsub.s32 %v1180, %v1182
    %v1184 = vrot.slane %v1168, %v1183
    %v1186 = vunpack.c.l.s4 1966171168
    %v1187 = vunpack.c.0.s8 %v1186
    %v1188 = vlaneseq
    %v1189 = vshrl.u32 %v1188, 7
    %v1190 = vsub.s32 %v1187, %v1189
    %v1191 = vrot.slane %v1169, %v1190
    %v1193 = vunpack.c.l.s4 1966171168
    %v1194 = vunpack.c.0.s8 %v1193
    %v1195 = vlaneseq
    %v1196 = vshrl.u32 %v1195, 7
    %v1197 = vsub.s32 %v1194, %v1196
    %v1198 = vrot.slane %v1170, %v1197
    %v1199 = vcombine.high %v1177, %v1177
    %v1200 = vcombine.high %v1184, %v1184
    %v1201 = vcombine.high %v1191, %v1191
    %v1202 = vcombine.high %v1198, %v1198
    %v1203 = vcombine.high %v975, %v975
    %v1205 = vunpack.c.l.s4 1966171168
    %v1206 = vunpack.c.0.s8 %v1205
    %v1207 = vlaneseq
    %v1208 = vshrl.u32 %v1207, 7
    %v1209 = vsub.s32 %v1206, %v1208
    %v1210 = vrot.slane %v975, %v1209
    %v1212 = vunpack.c.l.s4 1966171168
    %v1213 = vunpack.c.0.s8 %v1212
    %v1214 = vlaneseq
    %v1215 = vshrl.u32 %v1214, 7
    %v1216 = vsub.s32 %v1213, %v1215
    %v1217 = vrot.slane %v1203, %v1216
    %v1218 = vcombine.high %v1210, %v1210
    %v1219 = vcombine.high %v1217, %v1217
    %v1221 = vunpack.c.l.s4 1966171168
    %v1222 = vunpack.c.0.s8 %v1221
    %v1223 = vlaneseq
    %v1224 = vshrl.u32 %v1223, 7
    %v1225 = vsub.s32 %v1222, %v1224
    %v1226 = vrot.slane %v1210, %v1225
    %v1228 = vunpack.c.l.s4 1966171168
    %v1229 = vunpack.c.0.s8 %v1228
    %v1230 = vlaneseq
    %v1231 = vshrl.u32 %v1230, 7
    %v1232 = vsub.s32 %v1229, %v1231
    %v1233 = vrot.slane %v1217, %v1232
    %v1235 = vunpack.c.l.s4 1966171168
    %v1236 = vunpack.c.0.s8 %v1235
    %v1237 = vlaneseq
    %v1238 = vshrl.u32 %v1237, 7
    %v1239 = vsub.s32 %v1236, %v1238
    %v1240 = vrot.slane %v1218, %v1239
    %v1242 = vunpack.c.l.s4 1966171168
    %v1243 = vunpack.c.0.s8 %v1242
    %v1244 = vlaneseq
    %v1245 = vshrl.u32 %v1244, 7
    %v1246 = vsub.s32 %v1243, %v1245
    %v1247 = vrot.slane %v1219, %v1246
    %v1248 = vcombine.high %v1226, %v1226
    %v1249 = vcombine.high %v1233, %v1233
    %v1250 = vcombine.high %v1240, %v1240
    %v1251 = vcombine.high %v1247, %v1247
    %v1252 = vlaneseq
    %v1253 = vshrl.u32 %v1252, 7
    %v1254 = vsub.s32 0, %v1253
    %v1255 = vrot.slane %v1177, %v1254
    %v1256 = vlaneseq
    %v1257 = vshrl.u32 %v1256, 7
    %v1258 = vsub.s32 0, %v1257
    %v1259 = vrot.slane %v1191, %v1258
    %v1260 = vlaneseq
    %v1261 = vshrl.u32 %v1260, 7
    %v1262 = vsub.s32 0, %v1261
    %v1263 = vrot.slane %v1199, %v1262
    %v1264 = vlaneseq
    %v1265 = vshrl.u32 %v1264, 7
    %v1266 = vsub.s32 0, %v1265
    %v1267 = vrot.slane %v1201, %v1266
    %v1268 = vlaneseq
    %v1269 = vshrl.u32 %v1268, 7
    %v1270 = vsub.s32 0, %v1269
    %v1271 = vrot.slane %v1184, %v1270
    %v1272 = vlaneseq
    %v1273 = vshrl.u32 %v1272, 7
    %v1274 = vsub.s32 0, %v1273
    %v1275 = vrot.slane %v1198, %v1274
    %v1276 = vlaneseq
    %v1277 = vshrl.u32 %v1276, 7
    %v1278 = vsub.s32 0, %v1277
    %v1279 = vrot.slane %v1200, %v1278
    %v1280 = vlaneseq
    %v1281 = vshrl.u32 %v1280, 7
    %v1282 = vsub.s32 0, %v1281
    %v1283 = vrot.slane %v1202, %v1282
    %v1284 = vlaneseq
    %v1285 = vshrl.u32 %v1284, 7
    %v1286 = vsub.s32 0, %v1285
    %v1287 = vrot.slane %v1226, %v1286
    %v1288 = vlaneseq
    %v1289 = vshrl.u32 %v1288, 7
    %v1290 = vsub.s32 0, %v1289
    %v1291 = vrot.slane %v1240, %v1290
    %v1292 = vlaneseq
    %v1293 = vshrl.u32 %v1292, 7
    %v1294 = vsub.s32 0, %v1293
    %v1295 = vrot.slane %v1248, %v1294
    %v1296 = vlaneseq
    %v1297 = vshrl.u32 %v1296, 7
    %v1298 = vsub.s32 0, %v1297
    %v1299 = vrot.slane %v1250, %v1298
    %v1300 = vlaneseq
    %v1301 = vshrl.u32 %v1300, 7
    %v1302 = vsub.s32 0, %v1301
    %v1303 = vrot.slane %v1233, %v1302
    %v1304 = vlaneseq
    %v1305 = vshrl.u32 %v1304, 7
    %v1306 = vsub.s32 0, %v1305
    %v1307 = vrot.slane %v1247, %v1306
    %v1308 = vlaneseq
    %v1309 = vshrl.u32 %v1308, 7
    %v1310 = vsub.s32 0, %v1309
    %v1311 = vrot.slane %v1249, %v1310
    %v1312 = vlaneseq
    %v1313 = vshrl.u32 %v1312, 7
    %v1314 = vsub.s32 0, %v1313
    %v1315 = vrot.slane %v1251, %v1314
    %vm1332 = vcmp.gt.f32.partialorder %v1255, %v982
    %vm1333 = vcmp.gt.f32.partialorder %v1255, %v986
    %vm1334 = vcmp.gt.f32.partialorder %v1259, %v993
    %vm1335 = vcmp.gt.f32.partialorder %v1259, %v997
    %vm1336 = vcmp.gt.f32.partialorder %v1263, %v1004
    %vm1337 = vcmp.gt.f32.partialorder %v1263, %v1008
    %vm1338 = vcmp.gt.f32.partialorder %v1267, %v1015
    %vm1339 = vcmp.gt.f32.partialorder %v1267, %v1019
    %vm1340 = vcmp.gt.f32.partialorder %v1271, %v1026
    %vm1341 = vcmp.gt.f32.partialorder %v1271, %v1030
    %vm1342 = vcmp.gt.f32.partialorder %v1275, %v1037
    %vm1343 = vcmp.gt.f32.partialorder %v1275, %v1041
    %vm1344 = vcmp.gt.f32.partialorder %v1279, %v1048
    %vm1345 = vcmp.gt.f32.partialorder %v1279, %v1052
    %vm1346 = vcmp.gt.f32.partialorder %v1283, %v1059
    %vm1347 = vcmp.gt.f32.partialorder %v1283, %v1063
    %vm1348 = vcmp.gt.f32.partialorder %v1287, %v1070
    %vm1349 = vcmp.gt.f32.partialorder %v1287, %v1074
    %vm1350 = vcmp.gt.f32.partialorder %v1291, %v1081
    %vm1351 = vcmp.gt.f32.partialorder %v1291, %v1085
    %vm1352 = vcmp.gt.f32.partialorder %v1295, %v1092
    %vm1353 = vcmp.gt.f32.partialorder %v1295, %v1096
    %vm1354 = vcmp.gt.f32.partialorder %v1299, %v1103
    %vm1355 = vcmp.gt.f32.partialorder %v1299, %v1107
    %vm1356 = vcmp.gt.f32.partialorder %v1303, %v1114
    %vm1357 = vcmp.gt.f32.partialorder %v1303, %v1118
    %vm1358 = vcmp.gt.f32.partialorder %v1307, %v1125
    %vm1359 = vcmp.gt.f32.partialorder %v1307, %v1129
    %vm1360 = vcmp.gt.f32.partialorder %v1311, %v1136
    %vm1361 = vcmp.gt.f32.partialorder %v1311, %v1140
    %vm1362 = vcmp.gt.f32.partialorder %v1315, %v1147
    %vm1363 = vcmp.gt.f32.partialorder %v1315, %v1151
    %v1364 = vsel %vm1332, 1, 0
    %v1365 = vsel %vm1333, 1, 0
    %v1366 = vsel %vm1334, 1, 0
    %v1367 = vsel %vm1335, 1, 0
    %v1368 = vsel %vm1336, 1, 0
    %v1369 = vsel %vm1337, 1, 0
    %v1370 = vsel %vm1338, 1, 0
    %v1371 = vsel %vm1339, 1, 0
    %v1372 = vsel %vm1340, 1, 0
    %v1373 = vsel %vm1341, 1, 0
    %v1374 = vsel %vm1342, 1, 0
    %v1375 = vsel %vm1343, 1, 0
    %v1376 = vsel %vm1344, 1, 0
    %v1377 = vsel %vm1345, 1, 0
    %v1378 = vsel %vm1346, 1, 0
    %v1379 = vsel %vm1347, 1, 0
    %v1380 = vsel %vm1348, 1, 0
    %v1381 = vsel %vm1349, 1, 0
    %v1382 = vsel %vm1350, 1, 0
    %v1383 = vsel %vm1351, 1, 0
    %v1384 = vsel %vm1352, 1, 0
    %v1385 = vsel %vm1353, 1, 0
    %v1386 = vsel %vm1354, 1, 0
    %v1387 = vsel %vm1355, 1, 0
    %v1388 = vsel %vm1356, 1, 0
    %v1389 = vsel %vm1357, 1, 0
    %v1390 = vsel %vm1358, 1, 0
    %v1391 = vsel %vm1359, 1, 0
    %v1392 = vsel %vm1360, 1, 0
    %v1393 = vsel %vm1361, 1, 0
    %v1394 = vsel %vm1362, 1, 0
    %v1395 = vsel %vm1363, 1, 0
    %v1396 = vcvt.s32.f32 %v1364
    %v1397 = vcvt.s32.f32 %v1365
    %v1398 = vcvt.s32.f32 %v1366
    %v1399 = vcvt.s32.f32 %v1367
    %v1400 = vcvt.s32.f32 %v1368
    %v1401 = vcvt.s32.f32 %v1369
    %v1402 = vcvt.s32.f32 %v1370
    %v1403 = vcvt.s32.f32 %v1371
    %v1404 = vcvt.s32.f32 %v1372
    %v1405 = vcvt.s32.f32 %v1373
    %v1406 = vcvt.s32.f32 %v1374
    %v1407 = vcvt.s32.f32 %v1375
    %v1408 = vcvt.s32.f32 %v1376
    %v1409 = vcvt.s32.f32 %v1377
    %v1410 = vcvt.s32.f32 %v1378
    %v1411 = vcvt.s32.f32 %v1379
    %v1412 = vcvt.s32.f32 %v1380
    %v1413 = vcvt.s32.f32 %v1381
    %v1414 = vcvt.s32.f32 %v1382
    %v1415 = vcvt.s32.f32 %v1383
    %v1416 = vcvt.s32.f32 %v1384
    %v1417 = vcvt.s32.f32 %v1385
    %v1418 = vcvt.s32.f32 %v1386
    %v1419 = vcvt.s32.f32 %v1387
    %v1420 = vcvt.s32.f32 %v1388
    %v1421 = vcvt.s32.f32 %v1389
    %v1422 = vcvt.s32.f32 %v1390
    %v1423 = vcvt.s32.f32 %v1391
    %v1424 = vcvt.s32.f32 %v1392
    %v1425 = vcvt.s32.f32 %v1393
    %v1426 = vcvt.s32.f32 %v1394
    %v1427 = vcvt.s32.f32 %v1395
    %v1428 = vsel %vm609, %v1396, 0.0
    %1429 = vadd.xlane.f32.xlu0 %v1428
    %v1430 = vpop.xlane.xlu0 %1429
    %v1431 = vsel %vm609, %v1397, 0.0
    %1432 = vadd.xlane.f32.xlu0 %v1431
    %v1433 = vpop.xlane.xlu0 %1432
    %v1434 = vsel %vm609, %v1398, 0.0
    %1435 = vadd.xlane.f32.xlu0 %v1434
    %v1436 = vpop.xlane.xlu0 %1435
    %v1437 = vsel %vm609, %v1399, 0.0
    %1438 = vadd.xlane.f32.xlu0 %v1437
    %v1439 = vpop.xlane.xlu0 %1438
    %v1440 = vsel %vm609, %v1400, 0.0
    %1441 = vadd.xlane.f32.xlu0 %v1440
    %v1442 = vpop.xlane.xlu0 %1441
    %v1443 = vsel %vm609, %v1401, 0.0
    %1444 = vadd.xlane.f32.xlu0 %v1443
    %v1445 = vpop.xlane.xlu0 %1444
    %v1446 = vsel %vm609, %v1402, 0.0
    %1447 = vadd.xlane.f32.xlu0 %v1446
    %v1448 = vpop.xlane.xlu0 %1447
    %v1449 = vsel %vm609, %v1403, 0.0
    %1450 = vadd.xlane.f32.xlu0 %v1449
    %v1451 = vpop.xlane.xlu0 %1450
    %v1452 = vsel %vm609, %v1404, 0.0
    %1453 = vadd.xlane.f32.xlu0 %v1452
    %v1454 = vpop.xlane.xlu0 %1453
    %v1455 = vsel %vm609, %v1405, 0.0
    %1456 = vadd.xlane.f32.xlu0 %v1455
    %v1457 = vpop.xlane.xlu0 %1456
    %v1458 = vsel %vm609, %v1406, 0.0
    %1459 = vadd.xlane.f32.xlu0 %v1458
    %v1460 = vpop.xlane.xlu0 %1459
    %v1461 = vsel %vm609, %v1407, 0.0
    %1462 = vadd.xlane.f32.xlu0 %v1461
    %v1463 = vpop.xlane.xlu0 %1462
    %v1464 = vsel %vm609, %v1408, 0.0
    %1465 = vadd.xlane.f32.xlu0 %v1464
    %v1466 = vpop.xlane.xlu0 %1465
    %v1467 = vsel %vm609, %v1409, 0.0
    %1468 = vadd.xlane.f32.xlu0 %v1467
    %v1469 = vpop.xlane.xlu0 %1468
    %v1470 = vsel %vm609, %v1410, 0.0
    %1471 = vadd.xlane.f32.xlu0 %v1470
    %v1472 = vpop.xlane.xlu0 %1471
    %v1473 = vsel %vm609, %v1411, 0.0
    %1474 = vadd.xlane.f32.xlu0 %v1473
    %v1475 = vpop.xlane.xlu0 %1474
    %v1476 = vsel %vm609, %v1412, 0.0
    %1477 = vadd.xlane.f32.xlu0 %v1476
    %v1478 = vpop.xlane.xlu0 %1477
    %v1479 = vsel %vm609, %v1413, 0.0
    %1480 = vadd.xlane.f32.xlu0 %v1479
    %v1481 = vpop.xlane.xlu0 %1480
    %v1482 = vsel %vm609, %v1414, 0.0
    %1483 = vadd.xlane.f32.xlu0 %v1482
    %v1484 = vpop.xlane.xlu0 %1483
    %v1485 = vsel %vm609, %v1415, 0.0
    %1486 = vadd.xlane.f32.xlu0 %v1485
    %v1487 = vpop.xlane.xlu0 %1486
    %v1488 = vsel %vm609, %v1416, 0.0
    %1489 = vadd.xlane.f32.xlu0 %v1488
    %v1490 = vpop.xlane.xlu0 %1489
    %v1491 = vsel %vm609, %v1417, 0.0
    %1492 = vadd.xlane.f32.xlu0 %v1491
    %v1493 = vpop.xlane.xlu0 %1492
    %v1494 = vsel %vm609, %v1418, 0.0
    %1495 = vadd.xlane.f32.xlu0 %v1494
    %v1496 = vpop.xlane.xlu0 %1495
    %v1497 = vsel %vm609, %v1419, 0.0
    %1498 = vadd.xlane.f32.xlu0 %v1497
    %v1499 = vpop.xlane.xlu0 %1498
    %v1500 = vsel %vm609, %v1420, 0.0
    %1501 = vadd.xlane.f32.xlu0 %v1500
    %v1502 = vpop.xlane.xlu0 %1501
    %v1503 = vsel %vm609, %v1421, 0.0
    %1504 = vadd.xlane.f32.xlu0 %v1503
    %v1505 = vpop.xlane.xlu0 %1504
    %v1506 = vsel %vm609, %v1422, 0.0
    %1507 = vadd.xlane.f32.xlu0 %v1506
    %v1508 = vpop.xlane.xlu0 %1507
    %v1509 = vsel %vm609, %v1423, 0.0
    %1510 = vadd.xlane.f32.xlu0 %v1509
    %v1511 = vpop.xlane.xlu0 %1510
    %v1512 = vsel %vm609, %v1424, 0.0
    %1513 = vadd.xlane.f32.xlu0 %v1512
    %v1514 = vpop.xlane.xlu0 %1513
    %v1515 = vsel %vm609, %v1425, 0.0
    %1516 = vadd.xlane.f32.xlu0 %v1515
    %v1517 = vpop.xlane.xlu0 %1516
    %v1518 = vsel %vm609, %v1426, 0.0
    %1519 = vadd.xlane.f32.xlu0 %v1518
    %v1520 = vpop.xlane.xlu0 %1519
    %v1521 = vsel %vm609, %v1427, 0.0
    %1522 = vadd.xlane.f32.xlu0 %v1521
    %v1523 = vpop.xlane.xlu0 %1522
    %v1524 = vadd.f32 %v1430, 1.0
    %v1525 = vadd.f32 %v1433, 1.0
    %v1526 = vadd.f32 %v1436, 1.0
    %v1527 = vadd.f32 %v1439, 1.0
    %v1528 = vadd.f32 %v1442, 1.0
    %v1529 = vadd.f32 %v1445, 1.0
    %v1530 = vadd.f32 %v1448, 1.0
    %v1531 = vadd.f32 %v1451, 1.0
    %v1532 = vadd.f32 %v1454, 1.0
    %v1533 = vadd.f32 %v1457, 1.0
    %v1534 = vadd.f32 %v1460, 1.0
    %v1535 = vadd.f32 %v1463, 1.0
    %v1536 = vadd.f32 %v1466, 1.0
    %v1537 = vadd.f32 %v1469, 1.0
    %v1538 = vadd.f32 %v1472, 1.0
    %v1539 = vadd.f32 %v1475, 1.0
    %v1540 = vadd.f32 %v1478, 1.0
    %v1541 = vadd.f32 %v1481, 1.0
    %v1542 = vadd.f32 %v1484, 1.0
    %v1543 = vadd.f32 %v1487, 1.0
    %v1544 = vadd.f32 %v1490, 1.0
    %v1545 = vadd.f32 %v1493, 1.0
    %v1546 = vadd.f32 %v1496, 1.0
    %v1547 = vadd.f32 %v1499, 1.0
    %v1548 = vadd.f32 %v1502, 1.0
    %v1549 = vadd.f32 %v1505, 1.0
    %v1550 = vadd.f32 %v1508, 1.0
    %v1551 = vadd.f32 %v1511, 1.0
    %v1552 = vadd.f32 %v1514, 1.0
    %v1553 = vadd.f32 %v1517, 1.0
    %v1554 = vadd.f32 %v1520, 1.0
    %v1555 = vadd.f32 %v1523, 1.0
    %v1556 = vmul.f32 %v1524, %v738
    %v1557 = vmul.f32 %v1525, %v738
    %v1558 = vmul.f32 %v1526, %v738
    %v1559 = vmul.f32 %v1527, %v738
    %v1560 = vmul.f32 %v1528, %v738
    %v1561 = vmul.f32 %v1529, %v738
    %v1562 = vmul.f32 %v1530, %v738
    %v1563 = vmul.f32 %v1531, %v738
    %v1564 = vmul.f32 %v1532, %v738
    %v1565 = vmul.f32 %v1533, %v738
    %v1566 = vmul.f32 %v1534, %v738
    %v1567 = vmul.f32 %v1535, %v738
    %v1568 = vmul.f32 %v1536, %v738
    %v1569 = vmul.f32 %v1537, %v738
    %v1570 = vmul.f32 %v1538, %v738
    %v1571 = vmul.f32 %v1539, %v738
    %v1572 = vmul.f32 %v1540, %v738
    %v1573 = vmul.f32 %v1541, %v738
    %v1574 = vmul.f32 %v1542, %v738
    %v1575 = vmul.f32 %v1543, %v738
    %v1576 = vmul.f32 %v1544, %v738
    %v1577 = vmul.f32 %v1545, %v738
    %v1578 = vmul.f32 %v1546, %v738
    %v1579 = vmul.f32 %v1547, %v738
    %v1580 = vmul.f32 %v1548, %v738
    %v1581 = vmul.f32 %v1549, %v738
    %v1582 = vmul.f32 %v1550, %v738
    %v1583 = vmul.f32 %v1551, %v738
    %v1584 = vmul.f32 %v1552, %v738
    %v1585 = vmul.f32 %v1553, %v738
    %v1586 = vmul.f32 %v1554, %v738
    %v1587 = vmul.f32 %v1555, %v738
    %v1588 = vsub.f32 %v739, %v1556
    %v1589 = vsub.f32 %v740, %v1557
    %v1590 = vsub.f32 %v741, %v1558
    %v1591 = vsub.f32 %v742, %v1559
    %v1592 = vsub.f32 %v743, %v1560
    %v1593 = vsub.f32 %v744, %v1561
    %v1594 = vsub.f32 %v745, %v1562
    %v1595 = vsub.f32 %v746, %v1563
    %v1596 = vsub.f32 %v747, %v1564
    %v1597 = vsub.f32 %v748, %v1565
    %v1598 = vsub.f32 %v749, %v1566
    %v1599 = vsub.f32 %v750, %v1567
    %v1600 = vsub.f32 %v751, %v1568
    %v1601 = vsub.f32 %v752, %v1569
    %v1602 = vsub.f32 %v753, %v1570
    %v1603 = vsub.f32 %v754, %v1571
    %v1604 = vsub.f32 %v755, %v1572
    %v1605 = vsub.f32 %v756, %v1573
    %v1606 = vsub.f32 %v757, %v1574
    %v1607 = vsub.f32 %v758, %v1575
    %v1608 = vsub.f32 %v759, %v1576
    %v1609 = vsub.f32 %v760, %v1577
    %v1610 = vsub.f32 %v761, %v1578
    %v1611 = vsub.f32 %v762, %v1579
    %v1612 = vsub.f32 %v763, %v1580
    %v1613 = vsub.f32 %v764, %v1581
    %v1614 = vsub.f32 %v765, %v1582
    %v1615 = vsub.f32 %v766, %v1583
    %v1616 = vsub.f32 %v767, %v1584
    %v1617 = vsub.f32 %v768, %v1585
    %v1618 = vsub.f32 %v769, %v1586
    %v1619 = vsub.f32 %v770, %v1587
    %v1622 = vlaneseq
    %v1623 = vshrl.u32 %v1622, 7
    %v1624 = vsub.s32 0, %v1623
    %v1625 = vrot.slane %v42, %v1624
    %1627 = vbcast.lane.b32.xlu0 %v1625, 256
    %v1628 = vpop.permute.xlu0 %1627
    %s1630 = sor.u32 256, 8
    %1631 = vbcast.lane.b32.xlu0 %v1625, %s1630
    %v1632 = vpop.permute.xlu0 %1631
    %v1633 = vlaneseq
    %v1634 = vshrl.u32 %v1633, 7
    %v1635 = vsub.s32 1, %v1634
    %v1636 = vrot.slane %v42, %v1635
    %1638 = vbcast.lane.b32.xlu0 %v1636, 256
    %v1639 = vpop.permute.xlu0 %1638
    %s1641 = sor.u32 256, 8
    %1642 = vbcast.lane.b32.xlu0 %v1636, %s1641
    %v1643 = vpop.permute.xlu0 %1642
    %v1644 = vlaneseq
    %v1645 = vshrl.u32 %v1644, 7
    %v1646 = vsub.s32 2, %v1645
    %v1647 = vrot.slane %v42, %v1646
    %1649 = vbcast.lane.b32.xlu0 %v1647, 256
    %v1650 = vpop.permute.xlu0 %1649
    %s1652 = sor.u32 256, 8
    %1653 = vbcast.lane.b32.xlu0 %v1647, %s1652
    %v1654 = vpop.permute.xlu0 %1653
    %v1655 = vlaneseq
    %v1656 = vshrl.u32 %v1655, 7
    %v1657 = vsub.s32 3, %v1656
    %v1658 = vrot.slane %v42, %v1657
    %1660 = vbcast.lane.b32.xlu0 %v1658, 256
    %v1661 = vpop.permute.xlu0 %1660
    %s1663 = sor.u32 256, 8
    %1664 = vbcast.lane.b32.xlu0 %v1658, %s1663
    %v1665 = vpop.permute.xlu0 %1664
    %v1666 = vlaneseq
    %v1667 = vshrl.u32 %v1666, 7
    %v1668 = vsub.s32 4, %v1667
    %v1669 = vrot.slane %v42, %v1668
    %1671 = vbcast.lane.b32.xlu0 %v1669, 256
    %v1672 = vpop.permute.xlu0 %1671
    %s1674 = sor.u32 256, 8
    %1675 = vbcast.lane.b32.xlu0 %v1669, %s1674
    %v1676 = vpop.permute.xlu0 %1675
    %v1677 = vlaneseq
    %v1678 = vshrl.u32 %v1677, 7
    %v1679 = vsub.s32 5, %v1678
    %v1680 = vrot.slane %v42, %v1679
    %1682 = vbcast.lane.b32.xlu0 %v1680, 256
    %v1683 = vpop.permute.xlu0 %1682
    %s1685 = sor.u32 256, 8
    %1686 = vbcast.lane.b32.xlu0 %v1680, %s1685
    %v1687 = vpop.permute.xlu0 %1686
    %v1688 = vlaneseq
    %v1689 = vshrl.u32 %v1688, 7
    %v1690 = vsub.s32 6, %v1689
    %v1691 = vrot.slane %v42, %v1690
    %1693 = vbcast.lane.b32.xlu0 %v1691, 256
    %v1694 = vpop.permute.xlu0 %1693
    %s1696 = sor.u32 256, 8
    %1697 = vbcast.lane.b32.xlu0 %v1691, %s1696
    %v1698 = vpop.permute.xlu0 %1697
    %v1699 = vlaneseq
    %v1700 = vshrl.u32 %v1699, 7
    %v1701 = vsub.s32 7, %v1700
    %v1702 = vrot.slane %v42, %v1701
    %1704 = vbcast.lane.b32.xlu0 %v1702, 256
    %v1705 = vpop.permute.xlu0 %1704
    %s1707 = sor.u32 256, 8
    %1708 = vbcast.lane.b32.xlu0 %v1702, %s1707
    %v1709 = vpop.permute.xlu0 %1708
    %v1710 = vlaneseq
    %v1711 = vshrl.u32 %v1710, 7
    %v1712 = vsub.s32 0, %v1711
    %v1713 = vrot.slane %v43, %v1712
    %1715 = vbcast.lane.b32.xlu0 %v1713, 256
    %v1716 = vpop.permute.xlu0 %1715
    %s1718 = sor.u32 256, 8
    %1719 = vbcast.lane.b32.xlu0 %v1713, %s1718
    %v1720 = vpop.permute.xlu0 %1719
    %v1721 = vlaneseq
    %v1722 = vshrl.u32 %v1721, 7
    %v1723 = vsub.s32 1, %v1722
    %v1724 = vrot.slane %v43, %v1723
    %1726 = vbcast.lane.b32.xlu0 %v1724, 256
    %v1727 = vpop.permute.xlu0 %1726
    %s1729 = sor.u32 256, 8
    %1730 = vbcast.lane.b32.xlu0 %v1724, %s1729
    %v1731 = vpop.permute.xlu0 %1730
    %v1732 = vlaneseq
    %v1733 = vshrl.u32 %v1732, 7
    %v1734 = vsub.s32 2, %v1733
    %v1735 = vrot.slane %v43, %v1734
    %1737 = vbcast.lane.b32.xlu0 %v1735, 256
    %v1738 = vpop.permute.xlu0 %1737
    %s1740 = sor.u32 256, 8
    %1741 = vbcast.lane.b32.xlu0 %v1735, %s1740
    %v1742 = vpop.permute.xlu0 %1741
    %v1743 = vlaneseq
    %v1744 = vshrl.u32 %v1743, 7
    %v1745 = vsub.s32 3, %v1744
    %v1746 = vrot.slane %v43, %v1745
    %1748 = vbcast.lane.b32.xlu0 %v1746, 256
    %v1749 = vpop.permute.xlu0 %1748
    %s1751 = sor.u32 256, 8
    %1752 = vbcast.lane.b32.xlu0 %v1746, %s1751
    %v1753 = vpop.permute.xlu0 %1752
    %v1754 = vlaneseq
    %v1755 = vshrl.u32 %v1754, 7
    %v1756 = vsub.s32 4, %v1755
    %v1757 = vrot.slane %v43, %v1756
    %1759 = vbcast.lane.b32.xlu0 %v1757, 256
    %v1760 = vpop.permute.xlu0 %1759
    %s1762 = sor.u32 256, 8
    %1763 = vbcast.lane.b32.xlu0 %v1757, %s1762
    %v1764 = vpop.permute.xlu0 %1763
    %v1765 = vlaneseq
    %v1766 = vshrl.u32 %v1765, 7
    %v1767 = vsub.s32 5, %v1766
    %v1768 = vrot.slane %v43, %v1767
    %1770 = vbcast.lane.b32.xlu0 %v1768, 256
    %v1771 = vpop.permute.xlu0 %1770
    %s1773 = sor.u32 256, 8
    %1774 = vbcast.lane.b32.xlu0 %v1768, %s1773
    %v1775 = vpop.permute.xlu0 %1774
    %v1776 = vlaneseq
    %v1777 = vshrl.u32 %v1776, 7
    %v1778 = vsub.s32 6, %v1777
    %v1779 = vrot.slane %v43, %v1778
    %1781 = vbcast.lane.b32.xlu0 %v1779, 256
    %v1782 = vpop.permute.xlu0 %1781
    %s1784 = sor.u32 256, 8
    %1785 = vbcast.lane.b32.xlu0 %v1779, %s1784
    %v1786 = vpop.permute.xlu0 %1785
    %v1787 = vlaneseq
    %v1788 = vshrl.u32 %v1787, 7
    %v1789 = vsub.s32 7, %v1788
    %v1790 = vrot.slane %v43, %v1789
    %1792 = vbcast.lane.b32.xlu0 %v1790, 256
    %v1793 = vpop.permute.xlu0 %1792
    %s1795 = sor.u32 256, 8
    %1796 = vbcast.lane.b32.xlu0 %v1790, %s1795
    %v1797 = vpop.permute.xlu0 %1796
    %v1830 = vmul.f32 %v1588, %v1628
    %v1831 = vmul.f32 %v1589, %v1632
    %v1832 = vmul.f32 %v1590, %v1639
    %v1833 = vmul.f32 %v1591, %v1643
    %v1834 = vmul.f32 %v1592, %v1650
    %v1835 = vmul.f32 %v1593, %v1654
    %v1836 = vmul.f32 %v1594, %v1661
    %v1837 = vmul.f32 %v1595, %v1665
    %v1838 = vmul.f32 %v1596, %v1672
    %v1839 = vmul.f32 %v1597, %v1676
    %v1840 = vmul.f32 %v1598, %v1683
    %v1841 = vmul.f32 %v1599, %v1687
    %v1842 = vmul.f32 %v1600, %v1694
    %v1843 = vmul.f32 %v1601, %v1698
    %v1844 = vmul.f32 %v1602, %v1705
    %v1845 = vmul.f32 %v1603, %v1709
    %v1846 = vmul.f32 %v1604, %v1716
    %v1847 = vmul.f32 %v1605, %v1720
    %v1848 = vmul.f32 %v1606, %v1727
    %v1849 = vmul.f32 %v1607, %v1731
    %v1850 = vmul.f32 %v1608, %v1738
    %v1851 = vmul.f32 %v1609, %v1742
    %v1852 = vmul.f32 %v1610, %v1749
    %v1853 = vmul.f32 %v1611, %v1753
    %v1854 = vmul.f32 %v1612, %v1760
    %v1855 = vmul.f32 %v1613, %v1764
    %v1856 = vmul.f32 %v1614, %v1771
    %v1857 = vmul.f32 %v1615, %v1775
    %v1858 = vmul.f32 %v1616, %v1782
    %v1859 = vmul.f32 %v1617, %v1786
    %v1860 = vmul.f32 %v1618, %v1793
    %v1861 = vmul.f32 %v1619, %v1797
    %v1862 = vmul.f32 %v1830, 16.0
    %v1863 = vmul.f32 %v1831, 16.0
    %v1864 = vmul.f32 %v1832, 16.0
    %v1865 = vmul.f32 %v1833, 16.0
    %v1866 = vmul.f32 %v1834, 16.0
    %v1867 = vmul.f32 %v1835, 16.0
    %v1868 = vmul.f32 %v1836, 16.0
    %v1869 = vmul.f32 %v1837, 16.0
    %v1870 = vmul.f32 %v1838, 16.0
    %v1871 = vmul.f32 %v1839, 16.0
    %v1872 = vmul.f32 %v1840, 16.0
    %v1873 = vmul.f32 %v1841, 16.0
    %v1874 = vmul.f32 %v1842, 16.0
    %v1875 = vmul.f32 %v1843, 16.0
    %v1876 = vmul.f32 %v1844, 16.0
    %v1877 = vmul.f32 %v1845, 16.0
    %v1878 = vmul.f32 %v1846, 16.0
    %v1879 = vmul.f32 %v1847, 16.0
    %v1880 = vmul.f32 %v1848, 16.0
    %v1881 = vmul.f32 %v1849, 16.0
    %v1882 = vmul.f32 %v1850, 16.0
    %v1883 = vmul.f32 %v1851, 16.0
    %v1884 = vmul.f32 %v1852, 16.0
    %v1885 = vmul.f32 %v1853, 16.0
    %v1886 = vmul.f32 %v1854, 16.0
    %v1887 = vmul.f32 %v1855, 16.0
    %v1888 = vmul.f32 %v1856, 16.0
    %v1889 = vmul.f32 %v1857, 16.0
    %v1890 = vmul.f32 %v1858, 16.0
    %v1891 = vmul.f32 %v1859, 16.0
    %v1892 = vmul.f32 %v1860, 16.0
    %v1893 = vmul.f32 %v1861, 16.0
    %v1894 = vadd.f32 %v1862, 1.0
    %v1895 = vlog2.pop %v1894
    %v1896 = vmul.f32 %v1895, 0.6931472
    %v1897 = vmul.f32 -0.5, %v1862
    %v1898 = vadd.f32 %v1897, 1.0
    %v1899 = vmul.f32 %v1898, %v1862
    %v1900 = vand.u32 2147483647, %v1862
    %vm1901 = vcmp.lt.f32.partialorder %v1900, 0.0004427343
    %v1902 = vsel %vm1901, %v1899, %v1896
    %v1903 = vadd.f32 %v1863, 1.0
    %v1904 = vlog2.pop %v1903
    %v1905 = vmul.f32 %v1904, 0.6931472
    %v1906 = vmul.f32 -0.5, %v1863
    %v1907 = vadd.f32 %v1906, 1.0
    %v1908 = vmul.f32 %v1907, %v1863
    %v1909 = vand.u32 2147483647, %v1863
    %vm1910 = vcmp.lt.f32.partialorder %v1909, 0.0004427343
    %v1911 = vsel %vm1910, %v1908, %v1905
    %v1912 = vadd.f32 %v1864, 1.0
    %v1913 = vlog2.pop %v1912
    %v1914 = vmul.f32 %v1913, 0.6931472
    %v1915 = vmul.f32 -0.5, %v1864
    %v1916 = vadd.f32 %v1915, 1.0
    %v1917 = vmul.f32 %v1916, %v1864
    %v1918 = vand.u32 2147483647, %v1864
    %vm1919 = vcmp.lt.f32.partialorder %v1918, 0.0004427343
    %v1920 = vsel %vm1919, %v1917, %v1914
    %v1921 = vadd.f32 %v1865, 1.0
    %v1922 = vlog2.pop %v1921
    %v1923 = vmul.f32 %v1922, 0.6931472
    %v1924 = vmul.f32 -0.5, %v1865
    %v1925 = vadd.f32 %v1924, 1.0
    %v1926 = vmul.f32 %v1925, %v1865
    %v1927 = vand.u32 2147483647, %v1865
    %vm1928 = vcmp.lt.f32.partialorder %v1927, 0.0004427343
    %v1929 = vsel %vm1928, %v1926, %v1923
    %v1930 = vadd.f32 %v1866, 1.0
    %v1931 = vlog2.pop %v1930
    %v1932 = vmul.f32 %v1931, 0.6931472
    %v1933 = vmul.f32 -0.5, %v1866
    %v1934 = vadd.f32 %v1933, 1.0
    %v1935 = vmul.f32 %v1934, %v1866
    %v1936 = vand.u32 2147483647, %v1866
    %vm1937 = vcmp.lt.f32.partialorder %v1936, 0.0004427343
    %v1938 = vsel %vm1937, %v1935, %v1932
    %v1939 = vadd.f32 %v1867, 1.0
    %v1940 = vlog2.pop %v1939
    %v1941 = vmul.f32 %v1940, 0.6931472
    %v1942 = vmul.f32 -0.5, %v1867
    %v1943 = vadd.f32 %v1942, 1.0
    %v1944 = vmul.f32 %v1943, %v1867
    %v1945 = vand.u32 2147483647, %v1867
    %vm1946 = vcmp.lt.f32.partialorder %v1945, 0.0004427343
    %v1947 = vsel %vm1946, %v1944, %v1941
    %v1948 = vadd.f32 %v1868, 1.0
    %v1949 = vlog2.pop %v1948
    %v1950 = vmul.f32 %v1949, 0.6931472
    %v1951 = vmul.f32 -0.5, %v1868
    %v1952 = vadd.f32 %v1951, 1.0
    %v1953 = vmul.f32 %v1952, %v1868
    %v1954 = vand.u32 2147483647, %v1868
    %vm1955 = vcmp.lt.f32.partialorder %v1954, 0.0004427343
    %v1956 = vsel %vm1955, %v1953, %v1950
    %v1957 = vadd.f32 %v1869, 1.0
    %v1958 = vlog2.pop %v1957
    %v1959 = vmul.f32 %v1958, 0.6931472
    %v1960 = vmul.f32 -0.5, %v1869
    %v1961 = vadd.f32 %v1960, 1.0
    %v1962 = vmul.f32 %v1961, %v1869
    %v1963 = vand.u32 2147483647, %v1869
    %vm1964 = vcmp.lt.f32.partialorder %v1963, 0.0004427343
    %v1965 = vsel %vm1964, %v1962, %v1959
    %v1966 = vadd.f32 %v1870, 1.0
    %v1967 = vlog2.pop %v1966
    %v1968 = vmul.f32 %v1967, 0.6931472
    %v1969 = vmul.f32 -0.5, %v1870
    %v1970 = vadd.f32 %v1969, 1.0
    %v1971 = vmul.f32 %v1970, %v1870
    %v1972 = vand.u32 2147483647, %v1870
    %vm1973 = vcmp.lt.f32.partialorder %v1972, 0.0004427343
    %v1974 = vsel %vm1973, %v1971, %v1968
    %v1975 = vadd.f32 %v1871, 1.0
    %v1976 = vlog2.pop %v1975
    %v1977 = vmul.f32 %v1976, 0.6931472
    %v1978 = vmul.f32 -0.5, %v1871
    %v1979 = vadd.f32 %v1978, 1.0
    %v1980 = vmul.f32 %v1979, %v1871
    %v1981 = vand.u32 2147483647, %v1871
    %vm1982 = vcmp.lt.f32.partialorder %v1981, 0.0004427343
    %v1983 = vsel %vm1982, %v1980, %v1977
    %v1984 = vadd.f32 %v1872, 1.0
    %v1985 = vlog2.pop %v1984
    %v1986 = vmul.f32 %v1985, 0.6931472
    %v1987 = vmul.f32 -0.5, %v1872
    %v1988 = vadd.f32 %v1987, 1.0
    %v1989 = vmul.f32 %v1988, %v1872
    %v1990 = vand.u32 2147483647, %v1872
    %vm1991 = vcmp.lt.f32.partialorder %v1990, 0.0004427343
    %v1992 = vsel %vm1991, %v1989, %v1986
    %v1993 = vadd.f32 %v1873, 1.0
    %v1994 = vlog2.pop %v1993
    %v1995 = vmul.f32 %v1994, 0.6931472
    %v1996 = vmul.f32 -0.5, %v1873
    %v1997 = vadd.f32 %v1996, 1.0
    %v1998 = vmul.f32 %v1997, %v1873
    %v1999 = vand.u32 2147483647, %v1873
    %vm2000 = vcmp.lt.f32.partialorder %v1999, 0.0004427343
    %v2001 = vsel %vm2000, %v1998, %v1995
    %v2002 = vadd.f32 %v1874, 1.0
    %v2003 = vlog2.pop %v2002
    %v2004 = vmul.f32 %v2003, 0.6931472
    %v2005 = vmul.f32 -0.5, %v1874
    %v2006 = vadd.f32 %v2005, 1.0
    %v2007 = vmul.f32 %v2006, %v1874
    %v2008 = vand.u32 2147483647, %v1874
    %vm2009 = vcmp.lt.f32.partialorder %v2008, 0.0004427343
    %v2010 = vsel %vm2009, %v2007, %v2004
    %v2011 = vadd.f32 %v1875, 1.0
    %v2012 = vlog2.pop %v2011
    %v2013 = vmul.f32 %v2012, 0.6931472
    %v2014 = vmul.f32 -0.5, %v1875
    %v2015 = vadd.f32 %v2014, 1.0
    %v2016 = vmul.f32 %v2015, %v1875
    %v2017 = vand.u32 2147483647, %v1875
    %vm2018 = vcmp.lt.f32.partialorder %v2017, 0.0004427343
    %v2019 = vsel %vm2018, %v2016, %v2013
    %v2020 = vadd.f32 %v1876, 1.0
    %v2021 = vlog2.pop %v2020
    %v2022 = vmul.f32 %v2021, 0.6931472
    %v2023 = vmul.f32 -0.5, %v1876
    %v2024 = vadd.f32 %v2023, 1.0
    %v2025 = vmul.f32 %v2024, %v1876
    %v2026 = vand.u32 2147483647, %v1876
    %vm2027 = vcmp.lt.f32.partialorder %v2026, 0.0004427343
    %v2028 = vsel %vm2027, %v2025, %v2022
    %v2029 = vadd.f32 %v1877, 1.0
    %v2030 = vlog2.pop %v2029
    %v2031 = vmul.f32 %v2030, 0.6931472
    %v2032 = vmul.f32 -0.5, %v1877
    %v2033 = vadd.f32 %v2032, 1.0
    %v2034 = vmul.f32 %v2033, %v1877
    %v2035 = vand.u32 2147483647, %v1877
    %vm2036 = vcmp.lt.f32.partialorder %v2035, 0.0004427343
    %v2037 = vsel %vm2036, %v2034, %v2031
    %v2038 = vadd.f32 %v1878, 1.0
    %v2039 = vlog2.pop %v2038
    %v2040 = vmul.f32 %v2039, 0.6931472
    %v2041 = vmul.f32 -0.5, %v1878
    %v2042 = vadd.f32 %v2041, 1.0
    %v2043 = vmul.f32 %v2042, %v1878
    %v2044 = vand.u32 2147483647, %v1878
    %vm2045 = vcmp.lt.f32.partialorder %v2044, 0.0004427343
    %v2046 = vsel %vm2045, %v2043, %v2040
    %v2047 = vadd.f32 %v1879, 1.0
    %v2048 = vlog2.pop %v2047
    %v2049 = vmul.f32 %v2048, 0.6931472
    %v2050 = vmul.f32 -0.5, %v1879
    %v2051 = vadd.f32 %v2050, 1.0
    %v2052 = vmul.f32 %v2051, %v1879
    %v2053 = vand.u32 2147483647, %v1879
    %vm2054 = vcmp.lt.f32.partialorder %v2053, 0.0004427343
    %v2055 = vsel %vm2054, %v2052, %v2049
    %v2056 = vadd.f32 %v1880, 1.0
    %v2057 = vlog2.pop %v2056
    %v2058 = vmul.f32 %v2057, 0.6931472
    %v2059 = vmul.f32 -0.5, %v1880
    %v2060 = vadd.f32 %v2059, 1.0
    %v2061 = vmul.f32 %v2060, %v1880
    %v2062 = vand.u32 2147483647, %v1880
    %vm2063 = vcmp.lt.f32.partialorder %v2062, 0.0004427343
    %v2064 = vsel %vm2063, %v2061, %v2058
    %v2065 = vadd.f32 %v1881, 1.0
    %v2066 = vlog2.pop %v2065
    %v2067 = vmul.f32 %v2066, 0.6931472
    %v2068 = vmul.f32 -0.5, %v1881
    %v2069 = vadd.f32 %v2068, 1.0
    %v2070 = vmul.f32 %v2069, %v1881
    %v2071 = vand.u32 2147483647, %v1881
    %vm2072 = vcmp.lt.f32.partialorder %v2071, 0.0004427343
    %v2073 = vsel %vm2072, %v2070, %v2067
    %v2074 = vadd.f32 %v1882, 1.0
    %v2075 = vlog2.pop %v2074
    %v2076 = vmul.f32 %v2075, 0.6931472
    %v2077 = vmul.f32 -0.5, %v1882
    %v2078 = vadd.f32 %v2077, 1.0
    %v2079 = vmul.f32 %v2078, %v1882
    %v2080 = vand.u32 2147483647, %v1882
    %vm2081 = vcmp.lt.f32.partialorder %v2080, 0.0004427343
    %v2082 = vsel %vm2081, %v2079, %v2076
    %v2083 = vadd.f32 %v1883, 1.0
    %v2084 = vlog2.pop %v2083
    %v2085 = vmul.f32 %v2084, 0.6931472
    %v2086 = vmul.f32 -0.5, %v1883
    %v2087 = vadd.f32 %v2086, 1.0
    %v2088 = vmul.f32 %v2087, %v1883
    %v2089 = vand.u32 2147483647, %v1883
    %vm2090 = vcmp.lt.f32.partialorder %v2089, 0.0004427343
    %v2091 = vsel %vm2090, %v2088, %v2085
    %v2092 = vadd.f32 %v1884, 1.0
    %v2093 = vlog2.pop %v2092
    %v2094 = vmul.f32 %v2093, 0.6931472
    %v2095 = vmul.f32 -0.5, %v1884
    %v2096 = vadd.f32 %v2095, 1.0
    %v2097 = vmul.f32 %v2096, %v1884
    %v2098 = vand.u32 2147483647, %v1884
    %vm2099 = vcmp.lt.f32.partialorder %v2098, 0.0004427343
    %v2100 = vsel %vm2099, %v2097, %v2094
    %v2101 = vadd.f32 %v1885, 1.0
    %v2102 = vlog2.pop %v2101
    %v2103 = vmul.f32 %v2102, 0.6931472
    %v2104 = vmul.f32 -0.5, %v1885
    %v2105 = vadd.f32 %v2104, 1.0
    %v2106 = vmul.f32 %v2105, %v1885
    %v2107 = vand.u32 2147483647, %v1885
    %vm2108 = vcmp.lt.f32.partialorder %v2107, 0.0004427343
    %v2109 = vsel %vm2108, %v2106, %v2103
    %v2110 = vadd.f32 %v1886, 1.0
    %v2111 = vlog2.pop %v2110
    %v2112 = vmul.f32 %v2111, 0.6931472
    %v2113 = vmul.f32 -0.5, %v1886
    %v2114 = vadd.f32 %v2113, 1.0
    %v2115 = vmul.f32 %v2114, %v1886
    %v2116 = vand.u32 2147483647, %v1886
    %vm2117 = vcmp.lt.f32.partialorder %v2116, 0.0004427343
    %v2118 = vsel %vm2117, %v2115, %v2112
    %v2119 = vadd.f32 %v1887, 1.0
    %v2120 = vlog2.pop %v2119
    %v2121 = vmul.f32 %v2120, 0.6931472
    %v2122 = vmul.f32 -0.5, %v1887
    %v2123 = vadd.f32 %v2122, 1.0
    %v2124 = vmul.f32 %v2123, %v1887
    %v2125 = vand.u32 2147483647, %v1887
    %vm2126 = vcmp.lt.f32.partialorder %v2125, 0.0004427343
    %v2127 = vsel %vm2126, %v2124, %v2121
    %v2128 = vadd.f32 %v1888, 1.0
    %v2129 = vlog2.pop %v2128
    %v2130 = vmul.f32 %v2129, 0.6931472
    %v2131 = vmul.f32 -0.5, %v1888
    %v2132 = vadd.f32 %v2131, 1.0
    %v2133 = vmul.f32 %v2132, %v1888
    %v2134 = vand.u32 2147483647, %v1888
    %vm2135 = vcmp.lt.f32.partialorder %v2134, 0.0004427343
    %v2136 = vsel %vm2135, %v2133, %v2130
    %v2137 = vadd.f32 %v1889, 1.0
    %v2138 = vlog2.pop %v2137
    %v2139 = vmul.f32 %v2138, 0.6931472
    %v2140 = vmul.f32 -0.5, %v1889
    %v2141 = vadd.f32 %v2140, 1.0
    %v2142 = vmul.f32 %v2141, %v1889
    %v2143 = vand.u32 2147483647, %v1889
    %vm2144 = vcmp.lt.f32.partialorder %v2143, 0.0004427343
    %v2145 = vsel %vm2144, %v2142, %v2139
    %v2146 = vadd.f32 %v1890, 1.0
    %v2147 = vlog2.pop %v2146
    %v2148 = vmul.f32 %v2147, 0.6931472
    %v2149 = vmul.f32 -0.5, %v1890
    %v2150 = vadd.f32 %v2149, 1.0
    %v2151 = vmul.f32 %v2150, %v1890
    %v2152 = vand.u32 2147483647, %v1890
    %vm2153 = vcmp.lt.f32.partialorder %v2152, 0.0004427343
    %v2154 = vsel %vm2153, %v2151, %v2148
    %v2155 = vadd.f32 %v1891, 1.0
    %v2156 = vlog2.pop %v2155
    %v2157 = vmul.f32 %v2156, 0.6931472
    %v2158 = vmul.f32 -0.5, %v1891
    %v2159 = vadd.f32 %v2158, 1.0
    %v2160 = vmul.f32 %v2159, %v1891
    %v2161 = vand.u32 2147483647, %v1891
    %vm2162 = vcmp.lt.f32.partialorder %v2161, 0.0004427343
    %v2163 = vsel %vm2162, %v2160, %v2157
    %v2164 = vadd.f32 %v1892, 1.0
    %v2165 = vlog2.pop %v2164
    %v2166 = vmul.f32 %v2165, 0.6931472
    %v2167 = vmul.f32 -0.5, %v1892
    %v2168 = vadd.f32 %v2167, 1.0
    %v2169 = vmul.f32 %v2168, %v1892
    %v2170 = vand.u32 2147483647, %v1892
    %vm2171 = vcmp.lt.f32.partialorder %v2170, 0.0004427343
    %v2172 = vsel %vm2171, %v2169, %v2166
    %v2173 = vadd.f32 %v1893, 1.0
    %v2174 = vlog2.pop %v2173
    %v2175 = vmul.f32 %v2174, 0.6931472
    %v2176 = vmul.f32 -0.5, %v1893
    %v2177 = vadd.f32 %v2176, 1.0
    %v2178 = vmul.f32 %v2177, %v1893
    %v2179 = vand.u32 2147483647, %v1893
    %vm2180 = vcmp.lt.f32.partialorder %v2179, 0.0004427343
    %v2181 = vsel %vm2180, %v2178, %v2175
    %2214 = vset.pattern.permute.xlu0 0
    %2215 = vperm.xlu0 %2214, %v1902
    %v2216 = vpop.permute.xlu0 %2215
    %2217 = vset.pattern.permute.xlu0 0
    %2218 = vperm.xlu0 %2217, %v1911
    %v2219 = vpop.permute.xlu0 %2218
    %2220 = vset.pattern.permute.xlu0 0
    %2221 = vperm.xlu0 %2220, %v1920
    %v2222 = vpop.permute.xlu0 %2221
    %2223 = vset.pattern.permute.xlu0 0
    %2224 = vperm.xlu0 %2223, %v1929
    %v2225 = vpop.permute.xlu0 %2224
    %2226 = vset.pattern.permute.xlu0 0
    %2227 = vperm.xlu0 %2226, %v1938
    %v2228 = vpop.permute.xlu0 %2227
    %2229 = vset.pattern.permute.xlu0 0
    %2230 = vperm.xlu0 %2229, %v1947
    %v2231 = vpop.permute.xlu0 %2230
    %2232 = vset.pattern.permute.xlu0 0
    %2233 = vperm.xlu0 %2232, %v1956
    %v2234 = vpop.permute.xlu0 %2233
    %2235 = vset.pattern.permute.xlu0 0
    %2236 = vperm.xlu0 %2235, %v1965
    %v2237 = vpop.permute.xlu0 %2236
    %2238 = vset.pattern.permute.xlu0 0
    %2239 = vperm.xlu0 %2238, %v1974
    %v2240 = vpop.permute.xlu0 %2239
    %2241 = vset.pattern.permute.xlu0 0
    %2242 = vperm.xlu0 %2241, %v1983
    %v2243 = vpop.permute.xlu0 %2242
    %2244 = vset.pattern.permute.xlu0 0
    %2245 = vperm.xlu0 %2244, %v1992
    %v2246 = vpop.permute.xlu0 %2245
    %2247 = vset.pattern.permute.xlu0 0
    %2248 = vperm.xlu0 %2247, %v2001
    %v2249 = vpop.permute.xlu0 %2248
    %2250 = vset.pattern.permute.xlu0 0
    %2251 = vperm.xlu0 %2250, %v2010
    %v2252 = vpop.permute.xlu0 %2251
    %2253 = vset.pattern.permute.xlu0 0
    %2254 = vperm.xlu0 %2253, %v2019
    %v2255 = vpop.permute.xlu0 %2254
    %2256 = vset.pattern.permute.xlu0 0
    %2257 = vperm.xlu0 %2256, %v2028
    %v2258 = vpop.permute.xlu0 %2257
    %2259 = vset.pattern.permute.xlu0 0
    %2260 = vperm.xlu0 %2259, %v2037
    %v2261 = vpop.permute.xlu0 %2260
    %2262 = vset.pattern.permute.xlu0 0
    %2263 = vperm.xlu0 %2262, %v2046
    %v2264 = vpop.permute.xlu0 %2263
    %2265 = vset.pattern.permute.xlu0 0
    %2266 = vperm.xlu0 %2265, %v2055
    %v2267 = vpop.permute.xlu0 %2266
    %2268 = vset.pattern.permute.xlu0 0
    %2269 = vperm.xlu0 %2268, %v2064
    %v2270 = vpop.permute.xlu0 %2269
    %2271 = vset.pattern.permute.xlu0 0
    %2272 = vperm.xlu0 %2271, %v2073
    %v2273 = vpop.permute.xlu0 %2272
    %2274 = vset.pattern.permute.xlu0 0
    %2275 = vperm.xlu0 %2274, %v2082
    %v2276 = vpop.permute.xlu0 %2275
    %2277 = vset.pattern.permute.xlu0 0
    %2278 = vperm.xlu0 %2277, %v2091
    %v2279 = vpop.permute.xlu0 %2278
    %2280 = vset.pattern.permute.xlu0 0
    %2281 = vperm.xlu0 %2280, %v2100
    %v2282 = vpop.permute.xlu0 %2281
    %2283 = vset.pattern.permute.xlu0 0
    %2284 = vperm.xlu0 %2283, %v2109
    %v2285 = vpop.permute.xlu0 %2284
    %2286 = vset.pattern.permute.xlu0 0
    %2287 = vperm.xlu0 %2286, %v2118
    %v2288 = vpop.permute.xlu0 %2287
    %2289 = vset.pattern.permute.xlu0 0
    %2290 = vperm.xlu0 %2289, %v2127
    %v2291 = vpop.permute.xlu0 %2290
    %2292 = vset.pattern.permute.xlu0 0
    %2293 = vperm.xlu0 %2292, %v2136
    %v2294 = vpop.permute.xlu0 %2293
    %2295 = vset.pattern.permute.xlu0 0
    %2296 = vperm.xlu0 %2295, %v2145
    %v2297 = vpop.permute.xlu0 %2296
    %2298 = vset.pattern.permute.xlu0 0
    %2299 = vperm.xlu0 %2298, %v2154
    %v2300 = vpop.permute.xlu0 %2299
    %2301 = vset.pattern.permute.xlu0 0
    %2302 = vperm.xlu0 %2301, %v2163
    %v2303 = vpop.permute.xlu0 %2302
    %2304 = vset.pattern.permute.xlu0 0
    %2305 = vperm.xlu0 %2304, %v2172
    %v2306 = vpop.permute.xlu0 %2305
    %2307 = vset.pattern.permute.xlu0 0
    %2308 = vperm.xlu0 %2307, %v2181
    %v2309 = vpop.permute.xlu0 %2308
    %v2310 = vlaneseq
    %v2311 = vshrl.u32 %v2310, 7
    %v2312 = vsub.s32 %v54, %v2311
    %v2313 = vrot.slane %v2216, %v2312
    %v2314 = vlaneseq
    %v2315 = vshrl.u32 %v2314, 7
    %v2316 = vsub.s32 %v809, %v2315
    %v2317 = vrot.slane %v2219, %v2316
    %v2318 = vsel %vm814, %v2317, %v2313
    %v2319 = vlaneseq
    %v2320 = vshrl.u32 %v2319, 7
    %v2321 = vsub.s32 %v54, %v2320
    %v2322 = vrot.slane %v2222, %v2321
    %v2323 = vlaneseq
    %v2324 = vshrl.u32 %v2323, 7
    %v2325 = vsub.s32 %v809, %v2324
    %v2326 = vrot.slane %v2225, %v2325
    %v2327 = vsel %vm814, %v2326, %v2322
    %v2328 = vlaneseq
    %v2329 = vshrl.u32 %v2328, 7
    %v2330 = vsub.s32 %v54, %v2329
    %v2331 = vrot.slane %v2228, %v2330
    %v2332 = vlaneseq
    %v2333 = vshrl.u32 %v2332, 7
    %v2334 = vsub.s32 %v809, %v2333
    %v2335 = vrot.slane %v2231, %v2334
    %v2336 = vsel %vm814, %v2335, %v2331
    %v2337 = vlaneseq
    %v2338 = vshrl.u32 %v2337, 7
    %v2339 = vsub.s32 %v54, %v2338
    %v2340 = vrot.slane %v2234, %v2339
    %v2341 = vlaneseq
    %v2342 = vshrl.u32 %v2341, 7
    %v2343 = vsub.s32 %v809, %v2342
    %v2344 = vrot.slane %v2237, %v2343
    %v2345 = vsel %vm814, %v2344, %v2340
    %v2346 = vlaneseq
    %v2347 = vshrl.u32 %v2346, 7
    %v2348 = vsub.s32 %v54, %v2347
    %v2349 = vrot.slane %v2240, %v2348
    %v2350 = vlaneseq
    %v2351 = vshrl.u32 %v2350, 7
    %v2352 = vsub.s32 %v809, %v2351
    %v2353 = vrot.slane %v2243, %v2352
    %v2354 = vsel %vm814, %v2353, %v2349
    %v2355 = vlaneseq
    %v2356 = vshrl.u32 %v2355, 7
    %v2357 = vsub.s32 %v54, %v2356
    %v2358 = vrot.slane %v2246, %v2357
    %v2359 = vlaneseq
    %v2360 = vshrl.u32 %v2359, 7
    %v2361 = vsub.s32 %v809, %v2360
    %v2362 = vrot.slane %v2249, %v2361
    %v2363 = vsel %vm814, %v2362, %v2358
    %v2364 = vlaneseq
    %v2365 = vshrl.u32 %v2364, 7
    %v2366 = vsub.s32 %v54, %v2365
    %v2367 = vrot.slane %v2252, %v2366
    %v2368 = vlaneseq
    %v2369 = vshrl.u32 %v2368, 7
    %v2370 = vsub.s32 %v809, %v2369
    %v2371 = vrot.slane %v2255, %v2370
    %v2372 = vsel %vm814, %v2371, %v2367
    %v2373 = vlaneseq
    %v2374 = vshrl.u32 %v2373, 7
    %v2375 = vsub.s32 %v54, %v2374
    %v2376 = vrot.slane %v2258, %v2375
    %v2377 = vlaneseq
    %v2378 = vshrl.u32 %v2377, 7
    %v2379 = vsub.s32 %v809, %v2378
    %v2380 = vrot.slane %v2261, %v2379
    %v2381 = vsel %vm814, %v2380, %v2376
    %v2382 = vlaneseq
    %v2383 = vshrl.u32 %v2382, 7
    %v2384 = vsub.s32 %v54, %v2383
    %v2385 = vrot.slane %v2264, %v2384
    %v2386 = vlaneseq
    %v2387 = vshrl.u32 %v2386, 7
    %v2388 = vsub.s32 %v809, %v2387
    %v2389 = vrot.slane %v2267, %v2388
    %v2390 = vsel %vm814, %v2389, %v2385
    %v2391 = vlaneseq
    %v2392 = vshrl.u32 %v2391, 7
    %v2393 = vsub.s32 %v54, %v2392
    %v2394 = vrot.slane %v2270, %v2393
    %v2395 = vlaneseq
    %v2396 = vshrl.u32 %v2395, 7
    %v2397 = vsub.s32 %v809, %v2396
    %v2398 = vrot.slane %v2273, %v2397
    %v2399 = vsel %vm814, %v2398, %v2394
    %v2400 = vlaneseq
    %v2401 = vshrl.u32 %v2400, 7
    %v2402 = vsub.s32 %v54, %v2401
    %v2403 = vrot.slane %v2276, %v2402
    %v2404 = vlaneseq
    %v2405 = vshrl.u32 %v2404, 7
    %v2406 = vsub.s32 %v809, %v2405
    %v2407 = vrot.slane %v2279, %v2406
    %v2408 = vsel %vm814, %v2407, %v2403
    %v2409 = vlaneseq
    %v2410 = vshrl.u32 %v2409, 7
    %v2411 = vsub.s32 %v54, %v2410
    %v2412 = vrot.slane %v2282, %v2411
    %v2413 = vlaneseq
    %v2414 = vshrl.u32 %v2413, 7
    %v2415 = vsub.s32 %v809, %v2414
    %v2416 = vrot.slane %v2285, %v2415
    %v2417 = vsel %vm814, %v2416, %v2412
    %v2418 = vlaneseq
    %v2419 = vshrl.u32 %v2418, 7
    %v2420 = vsub.s32 %v54, %v2419
    %v2421 = vrot.slane %v2288, %v2420
    %v2422 = vlaneseq
    %v2423 = vshrl.u32 %v2422, 7
    %v2424 = vsub.s32 %v809, %v2423
    %v2425 = vrot.slane %v2291, %v2424
    %v2426 = vsel %vm814, %v2425, %v2421
    %v2427 = vlaneseq
    %v2428 = vshrl.u32 %v2427, 7
    %v2429 = vsub.s32 %v54, %v2428
    %v2430 = vrot.slane %v2294, %v2429
    %v2431 = vlaneseq
    %v2432 = vshrl.u32 %v2431, 7
    %v2433 = vsub.s32 %v809, %v2432
    %v2434 = vrot.slane %v2297, %v2433
    %v2435 = vsel %vm814, %v2434, %v2430
    %v2436 = vlaneseq
    %v2437 = vshrl.u32 %v2436, 7
    %v2438 = vsub.s32 %v54, %v2437
    %v2439 = vrot.slane %v2300, %v2438
    %v2440 = vlaneseq
    %v2441 = vshrl.u32 %v2440, 7
    %v2442 = vsub.s32 %v809, %v2441
    %v2443 = vrot.slane %v2303, %v2442
    %v2444 = vsel %vm814, %v2443, %v2439
    %v2445 = vlaneseq
    %v2446 = vshrl.u32 %v2445, 7
    %v2447 = vsub.s32 %v54, %v2446
    %v2448 = vrot.slane %v2306, %v2447
    %v2449 = vlaneseq
    %v2450 = vshrl.u32 %v2449, 7
    %v2451 = vsub.s32 %v809, %v2450
    %v2452 = vrot.slane %v2309, %v2451
    %v2453 = vsel %vm814, %v2452, %v2448
    %v2454 = vsel %vm951, %v2327, %v2318
    %v2455 = vsel %vm953, %v2336, %v2454
    %v2456 = vsel %vm955, %v2345, %v2455
    %v2457 = vsel %vm957, %v2354, %v2456
    %v2458 = vsel %vm959, %v2363, %v2457
    %v2459 = vsel %vm961, %v2372, %v2458
    %v2460 = vsel %vm963, %v2381, %v2459
    %v2461 = vsel %vm951, %v2399, %v2390
    %v2462 = vsel %vm953, %v2408, %v2461
    %v2463 = vsel %vm955, %v2417, %v2462
    %v2464 = vsel %vm957, %v2426, %v2463
    %v2465 = vsel %vm959, %v2435, %v2464
    %v2466 = vsel %vm961, %v2444, %v2465
    %v2467 = vsel %vm963, %v2453, %v2466
    %v2470 = vsel %vm609, %v2460, 0.0
    %v2471 = vsel %vm609, %v2467, 0.0
    %v2472 = vadd.f32 %v2470, %v2471
    %2473 = vadd.xlane.f32.xlu0 %v2472
    %v2474 = vpop.xlane.xlu0 %2473
    %v2475 = vrot.slane %v2474, 4
    %v2476 = vadd.f32 %v2474, %v2475
    %v2477 = vrot.slane %v2476, 2
    %v2478 = vadd.f32 %v2476, %v2477
    %v2479 = vrot.slane %v2478, 1
    %v2480 = vadd.f32 %v2478, %v2479
    %s2481 = vtos %v2480
    %v2482 = vsel %vm609, %v42, 0.0
    %v2483 = vsel %vm609, %v43, 0.0
    %v2484 = vadd.f32 %v2482, %v2483
    %2485 = vadd.xlane.f32.xlu0 %v2484
    %v2486 = vpop.xlane.xlu0 %2485
    %v2487 = vrot.slane %v2486, 4
    %v2488 = vadd.f32 %v2486, %v2487
    %v2489 = vrot.slane %v2488, 2
    %v2490 = vadd.f32 %v2488, %v2489
    %v2491 = vrot.slane %v2490, 1
    %v2492 = vadd.f32 %v2490, %v2491
    %s2493 = vtos %v2492
    %vm2494 = vcmp.eq.s32.totalorder %v51, 0
    %v2495 = vstv %s2481
    %v2496 = vstv %s2493
    %v2497 = vsel %vm2494, %v2495, %v2496
    %2498 = vst [vmem:[#allocation7] sm:$0x3] %v2497
    // Predicated region
    $region18: #{tpu_custom_call.1} parent=1 // pred_check
      _
    $region19: #{tpu_custom_call.1} parent=1 // pred_check_branch
      %2500 = sbr.rel (0) target = $region21
    $region20: #{tpu_custom_call.1} parent=1 // pred_region
      %s2502 = ssub.s32 32, 32
      %2503 = vsyncadd [#allocation4], %s2502
      %s2505 = sshll.u32 [#allocation7], 4
      %s2506 = int_to_ptr.vmem [resolvable:$true] %s2505
      %2508 = dma.vmem_to_hbm [thread:$0]  %s2506, 32, %s2, [#allocation4]
    $region21: #{tpu_custom_call.1} parent=1 // pred_fallthru
      _
    // Predicated region
    $region22: #{tpu_custom_call.1} parent=1 // pred_check
      _
    $region23: #{tpu_custom_call.1} parent=1 // pred_check_branch
      %2510 = sbr.rel (0) target = $region25
    $region24: #{tpu_custom_call.1} parent=1 // pred_region
      %2511 = dma.done [#allocation4], 32
    $region25: #{tpu_custom_call.1} parent=1 // pred_fallthru
      _
    %2512 = vsyncpa [#allocation3], 1
    %2513 = vsyncpa [#allocation6], 1
    %2514 = vsyncpa [#allocation4], 1

</llo_original>
